<compile_context>
chip_gen: v7x
topology: tpu7x:2x2x1
jax: 0.10.0
libtpu: 0.0.40
codegen_flags: <defaults>
</compile_context>

<pallas_src>
import functools

import jax
import jax.numpy as jnp
import numpy as np
from jax.experimental import pallas as pl
from jax.experimental.pallas import tpu as pltpu

EPS = 1e-5


# --------------------------------- kernel -------------------------------------
def resblock_kernel(x_ref, w1_ref, w2_ref, g1_ref, bt1_ref, g2_ref, bt2_ref,
                    o_ref, xpad_ref, y1pad_ref, *, K, pad):
    """Fused ResBlock forward for the whole batch (single grid step).

    x_ref    : (N, Cin, L)      input
    w*_ref   : (Cin*K, Cout, 1) repacked conv weights (bias-free, see wrapper)
    g*/bt*   : (C, 1)           BatchNorm gamma / beta
    o_ref    : (N, Cout, L)     output
    *pad_ref : (N, C, L+2*pad)  zero-haloed VMEM scratch for the conv taps
    """
    N, _, L = x_ref.shape

    def conv(padded_ref, w_ref):
        """acc[n,co,l] = sum_{ci,k} w[ci*K+k,co] * padded[n,ci,l+k] (VPU FMAs)."""
        cin = padded_ref.shape[1]
        cout = w_ref.shape[1]
        acc = jnp.zeros((N, cout, L), jnp.float32)
        for ci in range(cin):          # static, fully unrolled (<=24 taps)
            for k in range(K):
                # (cout,1) * (N,1,L) -> (N,cout,L): sublane/lane broadcasts.
                acc = acc + w_ref[ci * K + k] * padded_ref[:, ci:ci + 1, k:k + L]
        return acc

    def bn_relu(y, g_ref, b_ref):
        """Training-mode BatchNorm1d (biased variance over N and L) + ReLU."""
        inv_count = 1.0 / (N * L)
        mean = jnp.sum(jnp.sum(y, axis=2, keepdims=True),
                       axis=0, keepdims=True) * inv_count
        yc = y - mean
        var = jnp.sum(jnp.sum(yc * yc, axis=2, keepdims=True),
                      axis=0, keepdims=True) * inv_count
        inv = jax.lax.rsqrt(var + EPS)
        return jnp.maximum(g_ref[...] * (yc * inv) + b_ref[...], 0.0)

    # ---- layer 1: conv1 (bias cancels under BN) + BN1(train) + ReLU ---------
    xpad_ref[...] = jnp.zeros(xpad_ref.shape, xpad_ref.dtype)
    xpad_ref[:, :, pad:pad + L] = x_ref[...]
    y1 = bn_relu(conv(xpad_ref, w1_ref), g1_ref, bt1_ref)

    # ---- layer 2: conv2 (bias cancels under BN) + BN2(train) + ReLU ---------
    y1pad_ref[...] = jnp.zeros(y1pad_ref.shape, y1pad_ref.dtype)
    y1pad_ref[:, :, pad:pad + L] = y1
    y2 = bn_relu(conv(y1pad_ref, w2_ref), g2_ref, bt2_ref)

    # ---- identity residual add ----------------------------------------------
    o_ref[...] = (y2 + x_ref[...]).astype(o_ref.dtype)


# --------------------------------- wrapper ------------------------------------
def resblock_pallas(x_ncl, params, *, kernel_size):
    """x_ncl: (N, Cin, L) float32 (PyTorch NCL layout). Returns (N, Cout, L)."""
    (w1, _b1, g1, bt1, w2, _b2, g2, bt2) = params   # conv biases cancel (BN train)
    N, Cin, L = x_ncl.shape
    K = kernel_size
    pad = (K - 1) // 2
    Lp = L + 2 * pad
    Cmid, Cout = w1.shape[0], w2.shape[0]
    assert Cin == Cout, "identity residual add requires in_channels == out_channels"
    f32 = jnp.float32

    # Conv weights (Cout, Cin, K) -> (Cin*K, Cout, 1): w_ref[ci*K + k] is a
    # (Cout, 1) column that broadcasts against a (N, 1, L) input slice.
    def w_cols(w):
        co, ci, k = w.shape
        return jnp.transpose(w, (1, 2, 0)).reshape(ci * k, co)[:, :, None].astype(f32)

    col = lambda v: v.reshape(-1, 1).astype(f32)

    # Everything (in/out double buffers, both padded scratches, weights) is
    # VMEM-resident for the single fused step; stay far below the default
    # 32 MiB scoped limit (and v7x's 64 MiB physical VMEM).
    resident_bytes = 4 * (2 * N * Cin * L + 2 * N * Cout * L
                          + N * Cin * Lp + N * Cmid * Lp + N * Cmid * L
                          + (Cin + Cmid) * K * max(Cmid, Cout))
    assert resident_bytes < 8 * 1024 * 1024, \
        "ResBlock too large for the single-step fused kernel; re-tile (see TODO)."

    full = lambda shape: pl.BlockSpec(shape, lambda i: (0,) * len(shape))

    return pl.pallas_call(
        functools.partial(resblock_kernel, K=K, pad=pad),
        grid=(1,),
        in_specs=[full((N, Cin, L)),
                  full((Cin * K, Cmid, 1)),
                  full((Cmid * K, Cout, 1)),
                  full((Cmid, 1)), full((Cmid, 1)),
                  full((Cout, 1)), full((Cout, 1))],
        out_specs=full((N, Cout, L)),
        out_shape=jax.ShapeDtypeStruct((N, Cout, L), f32),
        scratch_shapes=[pltpu.VMEM((N, Cin, Lp), f32),
                        pltpu.VMEM((N, Cmid, Lp), f32)],
    )(x_ncl.astype(f32), w_cols(w1), w_cols(w2),
      col(g1), col(bt1), col(g2), col(bt2))


# ------------------------- pure-JAX reference ---------------------------------
def _conv1d_ncl(x, w, b, pad):
    y = jax.lax.conv_general_dilated(
        x, w, window_strides=(1,), padding=[(pad, pad)],
        dimension_numbers=("NCH", "OIH", "NCH"),
        precision=jax.lax.Precision.HIGHEST)
    return y + b[None, :, None]


def _bn_train(x, g, bt, eps=EPS):
    mean = jnp.mean(x, axis=(0, 2), keepdims=True)
    var = jnp.mean((x - mean) ** 2, axis=(0, 2), keepdims=True)
    return g[None, :, None] * (x - mean) * jax.lax.rsqrt(var + eps) + bt[None, :, None]


def resblock_reference(x, params, *, kernel_size):
    (w1, b1, g1, bt1, w2, b2, g2, bt2) = params
    pad = (kernel_size - 1) // 2
    y = jnp.maximum(_bn_train(_conv1d_ncl(x, w1, b1, pad), g1, bt1), 0.0)
    y = jnp.maximum(_bn_train(_conv1d_ncl(y, w2, b2, pad), g2, bt2), 0.0)
    return x + y
# -------------------------------------------------------------------------------


if __name__ == "__main__":
    # Small shapes consistent with the module: batch=2, in=out=4, mid=8, L=16, K=3
    N, Cin, Cmid, Cout, L, K = 2, 4, 8, 4, 16, 3

    key = jax.random.PRNGKey(0)
    ks = jax.random.split(key, 9)
    x = jax.random.normal(ks[0], (N, Cin, L), jnp.float32)

    # PyTorch Conv1d weight layout: (Cout, Cin, K)
    w1 = 0.2 * jax.random.normal(ks[1], (Cmid, Cin, K), jnp.float32)
    b1 = 0.1 * jax.random.normal(ks[2], (Cmid,), jnp.float32)
    g1 = 1.0 + 0.1 * jax.random.normal(ks[3], (Cmid,), jnp.float32)   # BN gamma
    bt1 = 0.1 * jax.random.normal(ks[4], (Cmid,), jnp.float32)        # BN beta
    w2 = 0.2 * jax.random.normal(ks[5], (Cout, Cmid, K), jnp.float32)
    b2 = 0.1 * jax.random.normal(ks[6], (Cout,), jnp.float32)
    g2 = 1.0 + 0.1 * jax.random.normal(ks[7], (Cout,), jnp.float32)
    bt2 = 0.1 * jax.random.normal(ks[8], (Cout,), jnp.float32)
    params = (w1, b1, g1, bt1, w2, b2, g2, bt2)

    out = jax.block_until_ready(resblock_pallas(x, params, kernel_size=K))
    ref = jax.block_until_ready(resblock_reference(x, params, kernel_size=K))
    np.testing.assert_allclose(np.asarray(out), np.asarray(ref), rtol=2e-3, atol=2e-3)

    print("KERNEL_OK")
</pallas_src>

<mosaic_0001>
module attributes {stable_mosaic.version = 11 : i64} {
  func.func @resblock_kernel(%arg0: i32, %arg1: memref<2x4x16xf32, #tpu.memory_space<vmem>>, %arg2: memref<12x8x1xf32, #tpu.memory_space<vmem>>, %arg3: memref<24x4x1xf32, #tpu.memory_space<vmem>>, %arg4: memref<8x1xf32, #tpu.memory_space<vmem>>, %arg5: memref<8x1xf32, #tpu.memory_space<vmem>>, %arg6: memref<4x1xf32, #tpu.memory_space<vmem>>, %arg7: memref<4x1xf32, #tpu.memory_space<vmem>>, %arg8: memref<2x4x16xf32, #tpu.memory_space<vmem>>, %arg9: memref<2x4x18xf32, #tpu.memory_space<vmem>>, %arg10: memref<2x8x18xf32, #tpu.memory_space<vmem>>) attributes {dimension_semantics = [#tpu.dimension_semantics<arbitrary>], iteration_bounds = array<i64: 1>, scalar_prefetch = 0 : i64, scratch_operands = 2 : i64, tpu.core_type = #tpu.core_type<tc>, window_params = [{pipeline_mode = #tpu.pipeline_mode<synchronous>, transform_indices = @transform_0, window_bounds = array<i64: 2, 4, 16>}, {pipeline_mode = #tpu.pipeline_mode<synchronous>, transform_indices = @transform_1, window_bounds = array<i64: 12, 8, 1>}, {pipeline_mode = #tpu.pipeline_mode<synchronous>, transform_indices = @transform_2, window_bounds = array<i64: 24, 4, 1>}, {pipeline_mode = #tpu.pipeline_mode<synchronous>, transform_indices = @transform_3, window_bounds = array<i64: 8, 1>}, {pipeline_mode = #tpu.pipeline_mode<synchronous>, transform_indices = @transform_4, window_bounds = array<i64: 8, 1>}, {pipeline_mode = #tpu.pipeline_mode<synchronous>, transform_indices = @transform_5, window_bounds = array<i64: 4, 1>}, {pipeline_mode = #tpu.pipeline_mode<synchronous>, transform_indices = @transform_6, window_bounds = array<i64: 4, 1>}, {pipeline_mode = #tpu.pipeline_mode<synchronous>, transform_indices = @transform_7, window_bounds = array<i64: 2, 4, 16>}]} {
    %cst = arith.constant 0.000000e+00 : f32
    %0 = vector.broadcast %cst : f32 to vector<2x4x18xf32>
    %c0 = arith.constant 0 : index
    %c0_0 = arith.constant 0 : index
    %c0_1 = arith.constant 0 : index
    %1 = vector.load %arg9[%c0, %c0_0, %c0_1] : memref<2x4x18xf32, #tpu.memory_space<vmem>>, vector<2x4x18xf32>
    tpu.vector_store %arg9[%c0, %c0_0, %c0_1], %0 {strides = array<i32>} : memref<2x4x18xf32, #tpu.memory_space<vmem>>, vector<2x4x18xf32>,
    %c0_2 = arith.constant 0 : index
    %c0_3 = arith.constant 0 : index
    %c0_4 = arith.constant 0 : index
    %2 = vector.load %arg1[%c0_2, %c0_3, %c0_4] : memref<2x4x16xf32, #tpu.memory_space<vmem>>, vector<2x4x16xf32>
    %c0_5 = arith.constant 0 : index
    %c0_6 = arith.constant 0 : index
    %c1 = arith.constant 1 : index
    %3 = vector.load %arg9[%c0_5, %c0_6, %c1] : memref<2x4x18xf32, #tpu.memory_space<vmem>>, vector<2x4x16xf32>
    tpu.vector_store %arg9[%c0_5, %c0_6, %c1], %2 {strides = array<i32>} : memref<2x4x18xf32, #tpu.memory_space<vmem>>, vector<2x4x16xf32>,
    %cst_7 = arith.constant 0.000000e+00 : f32
    %4 = vector.broadcast %cst_7 : f32 to vector<2x8x16xf32>
    %c0_8 = arith.constant 0 : index
    %c0_9 = arith.constant 0 : index
    %c0_10 = arith.constant 0 : index
    %5 = vector.load %arg2[%c0_8, %c0_9, %c0_10] : memref<12x8x1xf32, #tpu.memory_space<vmem>>, vector<1x8x1xf32>
    %6 = vector.shape_cast %5 : vector<1x8x1xf32> to vector<8x1xf32>
    %c0_11 = arith.constant 0 : index
    %c0_12 = arith.constant 0 : index
    %c0_13 = arith.constant 0 : index
    %7 = vector.load %arg9[%c0_11, %c0_12, %c0_13] : memref<2x4x18xf32, #tpu.memory_space<vmem>>, vector<2x1x16xf32>
    %8 = vector.shape_cast %6 : vector<8x1xf32> to vector<1x8x1xf32>
    %9 = vector.broadcast %8 : vector<1x8x1xf32> to vector<2x8x16xf32>
    %10 = vector.broadcast %7 : vector<2x1x16xf32> to vector<2x8x16xf32>
    %11 = arith.mulf %9, %10 : vector<2x8x16xf32>
    %12 = arith.addf %4, %11 : vector<2x8x16xf32>
    %c1_14 = arith.constant 1 : index
    %c0_15 = arith.constant 0 : index
    %c0_16 = arith.constant 0 : index
    %13 = vector.load %arg2[%c1_14, %c0_15, %c0_16] : memref<12x8x1xf32, #tpu.memory_space<vmem>>, vector<1x8x1xf32>
    %14 = vector.shape_cast %13 : vector<1x8x1xf32> to vector<8x1xf32>
    %c0_17 = arith.constant 0 : index
    %c0_18 = arith.constant 0 : index
    %c1_19 = arith.constant 1 : index
    %15 = vector.load %arg9[%c0_17, %c0_18, %c1_19] : memref<2x4x18xf32, #tpu.memory_space<vmem>>, vector<2x1x16xf32>
    %16 = vector.shape_cast %14 : vector<8x1xf32> to vector<1x8x1xf32>
    %17 = vector.broadcast %16 : vector<1x8x1xf32> to vector<2x8x16xf32>
    %18 = vector.broadcast %15 : vector<2x1x16xf32> to vector<2x8x16xf32>
    %19 = arith.mulf %17, %18 : vector<2x8x16xf32>
    %20 = arith.addf %12, %19 : vector<2x8x16xf32>
    %c2 = arith.constant 2 : index
    %c0_20 = arith.constant 0 : index
    %c0_21 = arith.constant 0 : index
    %21 = vector.load %arg2[%c2, %c0_20, %c0_21] : memref<12x8x1xf32, #tpu.memory_space<vmem>>, vector<1x8x1xf32>
    %22 = vector.shape_cast %21 : vector<1x8x1xf32> to vector<8x1xf32>
    %c0_22 = arith.constant 0 : index
    %c0_23 = arith.constant 0 : index
    %c2_24 = arith.constant 2 : index
    %23 = vector.load %arg9[%c0_22, %c0_23, %c2_24] : memref<2x4x18xf32, #tpu.memory_space<vmem>>, vector<2x1x16xf32>
    %24 = vector.shape_cast %22 : vector<8x1xf32> to vector<1x8x1xf32>
    %25 = vector.broadcast %24 : vector<1x8x1xf32> to vector<2x8x16xf32>
    %26 = vector.broadcast %23 : vector<2x1x16xf32> to vector<2x8x16xf32>
    %27 = arith.mulf %25, %26 : vector<2x8x16xf32>
    %28 = arith.addf %20, %27 : vector<2x8x16xf32>
    %c3 = arith.constant 3 : index
    %c0_25 = arith.constant 0 : index
    %c0_26 = arith.constant 0 : index
    %29 = vector.load %arg2[%c3, %c0_25, %c0_26] : memref<12x8x1xf32, #tpu.memory_space<vmem>>, vector<1x8x1xf32>
    %30 = vector.shape_cast %29 : vector<1x8x1xf32> to vector<8x1xf32>
    %c0_27 = arith.constant 0 : index
    %c1_28 = arith.constant 1 : index
    %c0_29 = arith.constant 0 : index
    %31 = vector.load %arg9[%c0_27, %c1_28, %c0_29] : memref<2x4x18xf32, #tpu.memory_space<vmem>>, vector<2x1x16xf32>
    %32 = vector.shape_cast %30 : vector<8x1xf32> to vector<1x8x1xf32>
    %33 = vector.broadcast %32 : vector<1x8x1xf32> to vector<2x8x16xf32>
    %34 = vector.broadcast %31 : vector<2x1x16xf32> to vector<2x8x16xf32>
    %35 = arith.mulf %33, %34 : vector<2x8x16xf32>
    %36 = arith.addf %28, %35 : vector<2x8x16xf32>
    %c4 = arith.constant 4 : index
    %c0_30 = arith.constant 0 : index
    %c0_31 = arith.constant 0 : index
    %37 = vector.load %arg2[%c4, %c0_30, %c0_31] : memref<12x8x1xf32, #tpu.memory_space<vmem>>, vector<1x8x1xf32>
    %38 = vector.shape_cast %37 : vector<1x8x1xf32> to vector<8x1xf32>
    %c0_32 = arith.constant 0 : index
    %c1_33 = arith.constant 1 : index
    %c1_34 = arith.constant 1 : index
    %39 = vector.load %arg9[%c0_32, %c1_33, %c1_34] : memref<2x4x18xf32, #tpu.memory_space<vmem>>, vector<2x1x16xf32>
    %40 = vector.shape_cast %38 : vector<8x1xf32> to vector<1x8x1xf32>
    %41 = vector.broadcast %40 : vector<1x8x1xf32> to vector<2x8x16xf32>
    %42 = vector.broadcast %39 : vector<2x1x16xf32> to vector<2x8x16xf32>
    %43 = arith.mulf %41, %42 : vector<2x8x16xf32>
    %44 = arith.addf %36, %43 : vector<2x8x16xf32>
    %c5 = arith.constant 5 : index
    %c0_35 = arith.constant 0 : index
    %c0_36 = arith.constant 0 : index
    %45 = vector.load %arg2[%c5, %c0_35, %c0_36] : memref<12x8x1xf32, #tpu.memory_space<vmem>>, vector<1x8x1xf32>
    %46 = vector.shape_cast %45 : vector<1x8x1xf32> to vector<8x1xf32>
    %c0_37 = arith.constant 0 : index
    %c1_38 = arith.constant 1 : index
    %c2_39 = arith.constant 2 : index
    %47 = vector.load %arg9[%c0_37, %c1_38, %c2_39] : memref<2x4x18xf32, #tpu.memory_space<vmem>>, vector<2x1x16xf32>
    %48 = vector.shape_cast %46 : vector<8x1xf32> to vector<1x8x1xf32>
    %49 = vector.broadcast %48 : vector<1x8x1xf32> to vector<2x8x16xf32>
    %50 = vector.broadcast %47 : vector<2x1x16xf32> to vector<2x8x16xf32>
    %51 = arith.mulf %49, %50 : vector<2x8x16xf32>
    %52 = arith.addf %44, %51 : vector<2x8x16xf32>
    %c6 = arith.constant 6 : index
    %c0_40 = arith.constant 0 : index
    %c0_41 = arith.constant 0 : index
    %53 = vector.load %arg2[%c6, %c0_40, %c0_41] : memref<12x8x1xf32, #tpu.memory_space<vmem>>, vector<1x8x1xf32>
    %54 = vector.shape_cast %53 : vector<1x8x1xf32> to vector<8x1xf32>
    %c0_42 = arith.constant 0 : index
    %c2_43 = arith.constant 2 : index
    %c0_44 = arith.constant 0 : index
    %55 = vector.load %arg9[%c0_42, %c2_43, %c0_44] : memref<2x4x18xf32, #tpu.memory_space<vmem>>, vector<2x1x16xf32>
    %56 = vector.shape_cast %54 : vector<8x1xf32> to vector<1x8x1xf32>
    %57 = vector.broadcast %56 : vector<1x8x1xf32> to vector<2x8x16xf32>
    %58 = vector.broadcast %55 : vector<2x1x16xf32> to vector<2x8x16xf32>
    %59 = arith.mulf %57, %58 : vector<2x8x16xf32>
    %60 = arith.addf %52, %59 : vector<2x8x16xf32>
    %c7 = arith.constant 7 : index
    %c0_45 = arith.constant 0 : index
    %c0_46 = arith.constant 0 : index
    %61 = vector.load %arg2[%c7, %c0_45, %c0_46] : memref<12x8x1xf32, #tpu.memory_space<vmem>>, vector<1x8x1xf32>
    %62 = vector.shape_cast %61 : vector<1x8x1xf32> to vector<8x1xf32>
    %c0_47 = arith.constant 0 : index
    %c2_48 = arith.constant 2 : index
    %c1_49 = arith.constant 1 : index
    %63 = vector.load %arg9[%c0_47, %c2_48, %c1_49] : memref<2x4x18xf32, #tpu.memory_space<vmem>>, vector<2x1x16xf32>
    %64 = vector.shape_cast %62 : vector<8x1xf32> to vector<1x8x1xf32>
    %65 = vector.broadcast %64 : vector<1x8x1xf32> to vector<2x8x16xf32>
    %66 = vector.broadcast %63 : vector<2x1x16xf32> to vector<2x8x16xf32>
    %67 = arith.mulf %65, %66 : vector<2x8x16xf32>
    %68 = arith.addf %60, %67 : vector<2x8x16xf32>
    %c8 = arith.constant 8 : index
    %c0_50 = arith.constant 0 : index
    %c0_51 = arith.constant 0 : index
    %69 = vector.load %arg2[%c8, %c0_50, %c0_51] : memref<12x8x1xf32, #tpu.memory_space<vmem>>, vector<1x8x1xf32>
    %70 = vector.shape_cast %69 : vector<1x8x1xf32> to vector<8x1xf32>
    %c0_52 = arith.constant 0 : index
    %c2_53 = arith.constant 2 : index
    %c2_54 = arith.constant 2 : index
    %71 = vector.load %arg9[%c0_52, %c2_53, %c2_54] : memref<2x4x18xf32, #tpu.memory_space<vmem>>, vector<2x1x16xf32>
    %72 = vector.shape_cast %70 : vector<8x1xf32> to vector<1x8x1xf32>
    %73 = vector.broadcast %72 : vector<1x8x1xf32> to vector<2x8x16xf32>
    %74 = vector.broadcast %71 : vector<2x1x16xf32> to vector<2x8x16xf32>
    %75 = arith.mulf %73, %74 : vector<2x8x16xf32>
    %76 = arith.addf %68, %75 : vector<2x8x16xf32>
    %c9 = arith.constant 9 : index
    %c0_55 = arith.constant 0 : index
    %c0_56 = arith.constant 0 : index
    %77 = vector.load %arg2[%c9, %c0_55, %c0_56] : memref<12x8x1xf32, #tpu.memory_space<vmem>>, vector<1x8x1xf32>
    %78 = vector.shape_cast %77 : vector<1x8x1xf32> to vector<8x1xf32>
    %c0_57 = arith.constant 0 : index
    %c3_58 = arith.constant 3 : index
    %c0_59 = arith.constant 0 : index
    %79 = vector.load %arg9[%c0_57, %c3_58, %c0_59] : memref<2x4x18xf32, #tpu.memory_space<vmem>>, vector<2x1x16xf32>
    %80 = vector.shape_cast %78 : vector<8x1xf32> to vector<1x8x1xf32>
    %81 = vector.broadcast %80 : vector<1x8x1xf32> to vector<2x8x16xf32>
    %82 = vector.broadcast %79 : vector<2x1x16xf32> to vector<2x8x16xf32>
    %83 = arith.mulf %81, %82 : vector<2x8x16xf32>
    %84 = arith.addf %76, %83 : vector<2x8x16xf32>
    %c10 = arith.constant 10 : index
    %c0_60 = arith.constant 0 : index
    %c0_61 = arith.constant 0 : index
    %85 = vector.load %arg2[%c10, %c0_60, %c0_61] : memref<12x8x1xf32, #tpu.memory_space<vmem>>, vector<1x8x1xf32>
    %86 = vector.shape_cast %85 : vector<1x8x1xf32> to vector<8x1xf32>
    %c0_62 = arith.constant 0 : index
    %c3_63 = arith.constant 3 : index
    %c1_64 = arith.constant 1 : index
    %87 = vector.load %arg9[%c0_62, %c3_63, %c1_64] : memref<2x4x18xf32, #tpu.memory_space<vmem>>, vector<2x1x16xf32>
    %88 = vector.shape_cast %86 : vector<8x1xf32> to vector<1x8x1xf32>
    %89 = vector.broadcast %88 : vector<1x8x1xf32> to vector<2x8x16xf32>
    %90 = vector.broadcast %87 : vector<2x1x16xf32> to vector<2x8x16xf32>
    %91 = arith.mulf %89, %90 : vector<2x8x16xf32>
    %92 = arith.addf %84, %91 : vector<2x8x16xf32>
    %c11 = arith.constant 11 : index
    %c0_65 = arith.constant 0 : index
    %c0_66 = arith.constant 0 : index
    %93 = vector.load %arg2[%c11, %c0_65, %c0_66] : memref<12x8x1xf32, #tpu.memory_space<vmem>>, vector<1x8x1xf32>
    %94 = vector.shape_cast %93 : vector<1x8x1xf32> to vector<8x1xf32>
    %c0_67 = arith.constant 0 : index
    %c3_68 = arith.constant 3 : index
    %c2_69 = arith.constant 2 : index
    %95 = vector.load %arg9[%c0_67, %c3_68, %c2_69] : memref<2x4x18xf32, #tpu.memory_space<vmem>>, vector<2x1x16xf32>
    %96 = vector.shape_cast %94 : vector<8x1xf32> to vector<1x8x1xf32>
    %97 = vector.broadcast %96 : vector<1x8x1xf32> to vector<2x8x16xf32>
    %98 = vector.broadcast %95 : vector<2x1x16xf32> to vector<2x8x16xf32>
    %99 = arith.mulf %97, %98 : vector<2x8x16xf32>
    %100 = arith.addf %92, %99 : vector<2x8x16xf32>
    %cst_70 = arith.constant dense<0.000000e+00> : vector<2x8xf32>
    %101 = vector.multi_reduction <add>, %100, %cst_70 [2] : vector<2x8x16xf32> to vector<2x8xf32>
    %102 = vector.shape_cast %101 : vector<2x8xf32> to vector<2x8x1xf32>
    %cst_71 = arith.constant dense<0.000000e+00> : vector<8x1xf32>
    %103 = vector.multi_reduction <add>, %102, %cst_71 [0] : vector<2x8x1xf32> to vector<8x1xf32>
    %104 = vector.shape_cast %103 : vector<8x1xf32> to vector<1x8x1xf32>
    %cst_72 = arith.constant 3.125000e-02 : f32
    %105 = vector.broadcast %cst_72 : f32 to vector<1x8x1xf32>
    %106 = arith.mulf %104, %105 : vector<1x8x1xf32>
    %107 = vector.broadcast %106 : vector<1x8x1xf32> to vector<2x8x16xf32>
    %108 = arith.subf %100, %107 : vector<2x8x16xf32>
    %109 = arith.mulf %108, %108 : vector<2x8x16xf32>
    %cst_73 = arith.constant dense<0.000000e+00> : vector<2x8xf32>
    %110 = vector.multi_reduction <add>, %109, %cst_73 [2] : vector<2x8x16xf32> to vector<2x8xf32>
    %111 = vector.shape_cast %110 : vector<2x8xf32> to vector<2x8x1xf32>
    %cst_74 = arith.constant dense<0.000000e+00> : vector<8x1xf32>
    %112 = vector.multi_reduction <add>, %111, %cst_74 [0] : vector<2x8x1xf32> to vector<8x1xf32>
    %113 = vector.shape_cast %112 : vector<8x1xf32> to vector<1x8x1xf32>
    %cst_75 = arith.constant 3.125000e-02 : f32
    %114 = vector.broadcast %cst_75 : f32 to vector<1x8x1xf32>
    %115 = arith.mulf %113, %114 : vector<1x8x1xf32>
    %cst_76 = arith.constant 9.99999974E-6 : f32
    %116 = vector.broadcast %cst_76 : f32 to vector<1x8x1xf32>
    %117 = arith.addf %115, %116 : vector<1x8x1xf32>
    %118 = math.rsqrt %117 : vector<1x8x1xf32>
    %c0_77 = arith.constant 0 : index
    %c0_78 = arith.constant 0 : index
    %119 = vector.load %arg4[%c0_77, %c0_78] : memref<8x1xf32, #tpu.memory_space<vmem>>, vector<8x1xf32>
    %120 = vector.broadcast %118 : vector<1x8x1xf32> to vector<2x8x16xf32>
    %121 = arith.mulf %108, %120 : vector<2x8x16xf32>
    %122 = vector.shape_cast %119 : vector<8x1xf32> to vector<1x8x1xf32>
    %123 = vector.broadcast %122 : vector<1x8x1xf32> to vector<2x8x16xf32>
    %124 = arith.mulf %123, %121 : vector<2x8x16xf32>
    %c0_79 = arith.constant 0 : index
    %c0_80 = arith.constant 0 : index
    %125 = vector.load %arg5[%c0_79, %c0_80] : memref<8x1xf32, #tpu.memory_space<vmem>>, vector<8x1xf32>
    %126 = vector.shape_cast %125 : vector<8x1xf32> to vector<1x8x1xf32>
    %127 = vector.broadcast %126 : vector<1x8x1xf32> to vector<2x8x16xf32>
    %128 = arith.addf %124, %127 : vector<2x8x16xf32>
    %cst_81 = arith.constant 0.000000e+00 : f32
    %129 = vector.broadcast %cst_81 : f32 to vector<2x8x16xf32>
    %130 = arith.maximumf %128, %129 : vector<2x8x16xf32>
    %cst_82 = arith.constant 0.000000e+00 : f32
    %131 = vector.broadcast %cst_82 : f32 to vector<2x8x18xf32>
    %c0_83 = arith.constant 0 : index
    %c0_84 = arith.constant 0 : index
    %c0_85 = arith.constant 0 : index
    %132 = vector.load %arg10[%c0_83, %c0_84, %c0_85] : memref<2x8x18xf32, #tpu.memory_space<vmem>>, vector<2x8x18xf32>
    tpu.vector_store %arg10[%c0_83, %c0_84, %c0_85], %131 {strides = array<i32>} : memref<2x8x18xf32, #tpu.memory_space<vmem>>, vector<2x8x18xf32>,
    %c0_86 = arith.constant 0 : index
    %c0_87 = arith.constant 0 : index
    %c1_88 = arith.constant 1 : index
    %133 = vector.load %arg10[%c0_86, %c0_87, %c1_88] : memref<2x8x18xf32, #tpu.memory_space<vmem>>, vector<2x8x16xf32>
    tpu.vector_store %arg10[%c0_86, %c0_87, %c1_88], %130 {strides = array<i32>} : memref<2x8x18xf32, #tpu.memory_space<vmem>>, vector<2x8x16xf32>,
    %cst_89 = arith.constant 0.000000e+00 : f32
    %134 = vector.broadcast %cst_89 : f32 to vector<2x4x16xf32>
    %c0_90 = arith.constant 0 : index
    %c0_91 = arith.constant 0 : index
    %c0_92 = arith.constant 0 : index
    %135 = vector.load %arg3[%c0_90, %c0_91, %c0_92] : memref<24x4x1xf32, #tpu.memory_space<vmem>>, vector<1x4x1xf32>
    %136 = vector.shape_cast %135 : vector<1x4x1xf32> to vector<4x1xf32>
    %c0_93 = arith.constant 0 : index
    %c0_94 = arith.constant 0 : index
    %c0_95 = arith.constant 0 : index
    %137 = vector.load %arg10[%c0_93, %c0_94, %c0_95] : memref<2x8x18xf32, #tpu.memory_space<vmem>>, vector<2x1x16xf32>
    %138 = vector.shape_cast %136 : vector<4x1xf32> to vector<1x4x1xf32>
    %139 = vector.broadcast %138 : vector<1x4x1xf32> to vector<2x4x16xf32>
    %140 = vector.broadcast %137 : vector<2x1x16xf32> to vector<2x4x16xf32>
    %141 = arith.mulf %139, %140 : vector<2x4x16xf32>
    %142 = arith.addf %134, %141 : vector<2x4x16xf32>
    %c1_96 = arith.constant 1 : index
    %c0_97 = arith.constant 0 : index
    %c0_98 = arith.constant 0 : index
    %143 = vector.load %arg3[%c1_96, %c0_97, %c0_98] : memref<24x4x1xf32, #tpu.memory_space<vmem>>, vector<1x4x1xf32>
    %144 = vector.shape_cast %143 : vector<1x4x1xf32> to vector<4x1xf32>
    %c0_99 = arith.constant 0 : index
    %c0_100 = arith.constant 0 : index
    %c1_101 = arith.constant 1 : index
    %145 = vector.load %arg10[%c0_99, %c0_100, %c1_101] : memref<2x8x18xf32, #tpu.memory_space<vmem>>, vector<2x1x16xf32>
    %146 = vector.shape_cast %144 : vector<4x1xf32> to vector<1x4x1xf32>
    %147 = vector.broadcast %146 : vector<1x4x1xf32> to vector<2x4x16xf32>
    %148 = vector.broadcast %145 : vector<2x1x16xf32> to vector<2x4x16xf32>
    %149 = arith.mulf %147, %148 : vector<2x4x16xf32>
    %150 = arith.addf %142, %149 : vector<2x4x16xf32>
    %c2_102 = arith.constant 2 : index
    %c0_103 = arith.constant 0 : index
    %c0_104 = arith.constant 0 : index
    %151 = vector.load %arg3[%c2_102, %c0_103, %c0_104] : memref<24x4x1xf32, #tpu.memory_space<vmem>>, vector<1x4x1xf32>
    %152 = vector.shape_cast %151 : vector<1x4x1xf32> to vector<4x1xf32>
    %c0_105 = arith.constant 0 : index
    %c0_106 = arith.constant 0 : index
    %c2_107 = arith.constant 2 : index
    %153 = vector.load %arg10[%c0_105, %c0_106, %c2_107] : memref<2x8x18xf32, #tpu.memory_space<vmem>>, vector<2x1x16xf32>
    %154 = vector.shape_cast %152 : vector<4x1xf32> to vector<1x4x1xf32>
    %155 = vector.broadcast %154 : vector<1x4x1xf32> to vector<2x4x16xf32>
    %156 = vector.broadcast %153 : vector<2x1x16xf32> to vector<2x4x16xf32>
    %157 = arith.mulf %155, %156 : vector<2x4x16xf32>
    %158 = arith.addf %150, %157 : vector<2x4x16xf32>
    %c3_108 = arith.constant 3 : index
    %c0_109 = arith.constant 0 : index
    %c0_110 = arith.constant 0 : index
    %159 = vector.load %arg3[%c3_108, %c0_109, %c0_110] : memref<24x4x1xf32, #tpu.memory_space<vmem>>, vector<1x4x1xf32>
    %160 = vector.shape_cast %159 : vector<1x4x1xf32> to vector<4x1xf32>
    %c0_111 = arith.constant 0 : index
    %c1_112 = arith.constant 1 : index
    %c0_113 = arith.constant 0 : index
    %161 = vector.load %arg10[%c0_111, %c1_112, %c0_113] : memref<2x8x18xf32, #tpu.memory_space<vmem>>, vector<2x1x16xf32>
    %162 = vector.shape_cast %160 : vector<4x1xf32> to vector<1x4x1xf32>
    %163 = vector.broadcast %162 : vector<1x4x1xf32> to vector<2x4x16xf32>
    %164 = vector.broadcast %161 : vector<2x1x16xf32> to vector<2x4x16xf32>
    %165 = arith.mulf %163, %164 : vector<2x4x16xf32>
    %166 = arith.addf %158, %165 : vector<2x4x16xf32>
    %c4_114 = arith.constant 4 : index
    %c0_115 = arith.constant 0 : index
    %c0_116 = arith.constant 0 : index
    %167 = vector.load %arg3[%c4_114, %c0_115, %c0_116] : memref<24x4x1xf32, #tpu.memory_space<vmem>>, vector<1x4x1xf32>
    %168 = vector.shape_cast %167 : vector<1x4x1xf32> to vector<4x1xf32>
    %c0_117 = arith.constant 0 : index
    %c1_118 = arith.constant 1 : index
    %c1_119 = arith.constant 1 : index
    %169 = vector.load %arg10[%c0_117, %c1_118, %c1_119] : memref<2x8x18xf32, #tpu.memory_space<vmem>>, vector<2x1x16xf32>
    %170 = vector.shape_cast %168 : vector<4x1xf32> to vector<1x4x1xf32>
    %171 = vector.broadcast %170 : vector<1x4x1xf32> to vector<2x4x16xf32>
    %172 = vector.broadcast %169 : vector<2x1x16xf32> to vector<2x4x16xf32>
    %173 = arith.mulf %171, %172 : vector<2x4x16xf32>
    %174 = arith.addf %166, %173 : vector<2x4x16xf32>
    %c5_120 = arith.constant 5 : index
    %c0_121 = arith.constant 0 : index
    %c0_122 = arith.constant 0 : index
    %175 = vector.load %arg3[%c5_120, %c0_121, %c0_122] : memref<24x4x1xf32, #tpu.memory_space<vmem>>, vector<1x4x1xf32>
    %176 = vector.shape_cast %175 : vector<1x4x1xf32> to vector<4x1xf32>
    %c0_123 = arith.constant 0 : index
    %c1_124 = arith.constant 1 : index
    %c2_125 = arith.constant 2 : index
    %177 = vector.load %arg10[%c0_123, %c1_124, %c2_125] : memref<2x8x18xf32, #tpu.memory_space<vmem>>, vector<2x1x16xf32>
    %178 = vector.shape_cast %176 : vector<4x1xf32> to vector<1x4x1xf32>
    %179 = vector.broadcast %178 : vector<1x4x1xf32> to vector<2x4x16xf32>
    %180 = vector.broadcast %177 : vector<2x1x16xf32> to vector<2x4x16xf32>
    %181 = arith.mulf %179, %180 : vector<2x4x16xf32>
    %182 = arith.addf %174, %181 : vector<2x4x16xf32>
    %c6_126 = arith.constant 6 : index
    %c0_127 = arith.constant 0 : index
    %c0_128 = arith.constant 0 : index
    %183 = vector.load %arg3[%c6_126, %c0_127, %c0_128] : memref<24x4x1xf32, #tpu.memory_space<vmem>>, vector<1x4x1xf32>
    %184 = vector.shape_cast %183 : vector<1x4x1xf32> to vector<4x1xf32>
    %c0_129 = arith.constant 0 : index
    %c2_130 = arith.constant 2 : index
    %c0_131 = arith.constant 0 : index
    %185 = vector.load %arg10[%c0_129, %c2_130, %c0_131] : memref<2x8x18xf32, #tpu.memory_space<vmem>>, vector<2x1x16xf32>
    %186 = vector.shape_cast %184 : vector<4x1xf32> to vector<1x4x1xf32>
    %187 = vector.broadcast %186 : vector<1x4x1xf32> to vector<2x4x16xf32>
    %188 = vector.broadcast %185 : vector<2x1x16xf32> to vector<2x4x16xf32>
    %189 = arith.mulf %187, %188 : vector<2x4x16xf32>
    %190 = arith.addf %182, %189 : vector<2x4x16xf32>
    %c7_132 = arith.constant 7 : index
    %c0_133 = arith.constant 0 : index
    %c0_134 = arith.constant 0 : index
    %191 = vector.load %arg3[%c7_132, %c0_133, %c0_134] : memref<24x4x1xf32, #tpu.memory_space<vmem>>, vector<1x4x1xf32>
    %192 = vector.shape_cast %191 : vector<1x4x1xf32> to vector<4x1xf32>
    %c0_135 = arith.constant 0 : index
    %c2_136 = arith.constant 2 : index
    %c1_137 = arith.constant 1 : index
    %193 = vector.load %arg10[%c0_135, %c2_136, %c1_137] : memref<2x8x18xf32, #tpu.memory_space<vmem>>, vector<2x1x16xf32>
    %194 = vector.shape_cast %192 : vector<4x1xf32> to vector<1x4x1xf32>
    %195 = vector.broadcast %194 : vector<1x4x1xf32> to vector<2x4x16xf32>
    %196 = vector.broadcast %193 : vector<2x1x16xf32> to vector<2x4x16xf32>
    %197 = arith.mulf %195, %196 : vector<2x4x16xf32>
    %198 = arith.addf %190, %197 : vector<2x4x16xf32>
    %c8_138 = arith.constant 8 : index
    %c0_139 = arith.constant 0 : index
    %c0_140 = arith.constant 0 : index
    %199 = vector.load %arg3[%c8_138, %c0_139, %c0_140] : memref<24x4x1xf32, #tpu.memory_space<vmem>>, vector<1x4x1xf32>
    %200 = vector.shape_cast %199 : vector<1x4x1xf32> to vector<4x1xf32>
    %c0_141 = arith.constant 0 : index
    %c2_142 = arith.constant 2 : index
    %c2_143 = arith.constant 2 : index
    %201 = vector.load %arg10[%c0_141, %c2_142, %c2_143] : memref<2x8x18xf32, #tpu.memory_space<vmem>>, vector<2x1x16xf32>
    %202 = vector.shape_cast %200 : vector<4x1xf32> to vector<1x4x1xf32>
    %203 = vector.broadcast %202 : vector<1x4x1xf32> to vector<2x4x16xf32>
    %204 = vector.broadcast %201 : vector<2x1x16xf32> to vector<2x4x16xf32>
    %205 = arith.mulf %203, %204 : vector<2x4x16xf32>
    %206 = arith.addf %198, %205 : vector<2x4x16xf32>
    %c9_144 = arith.constant 9 : index
    %c0_145 = arith.constant 0 : index
    %c0_146 = arith.constant 0 : index
    %207 = vector.load %arg3[%c9_144, %c0_145, %c0_146] : memref<24x4x1xf32, #tpu.memory_space<vmem>>, vector<1x4x1xf32>
    %208 = vector.shape_cast %207 : vector<1x4x1xf32> to vector<4x1xf32>
    %c0_147 = arith.constant 0 : index
    %c3_148 = arith.constant 3 : index
    %c0_149 = arith.constant 0 : index
    %209 = vector.load %arg10[%c0_147, %c3_148, %c0_149] : memref<2x8x18xf32, #tpu.memory_space<vmem>>, vector<2x1x16xf32>
    %210 = vector.shape_cast %208 : vector<4x1xf32> to vector<1x4x1xf32>
    %211 = vector.broadcast %210 : vector<1x4x1xf32> to vector<2x4x16xf32>
    %212 = vector.broadcast %209 : vector<2x1x16xf32> to vector<2x4x16xf32>
    %213 = arith.mulf %211, %212 : vector<2x4x16xf32>
    %214 = arith.addf %206, %213 : vector<2x4x16xf32>
    %c10_150 = arith.constant 10 : index
    %c0_151 = arith.constant 0 : index
    %c0_152 = arith.constant 0 : index
    %215 = vector.load %arg3[%c10_150, %c0_151, %c0_152] : memref<24x4x1xf32, #tpu.memory_space<vmem>>, vector<1x4x1xf32>
    %216 = vector.shape_cast %215 : vector<1x4x1xf32> to vector<4x1xf32>
    %c0_153 = arith.constant 0 : index
    %c3_154 = arith.constant 3 : index
    %c1_155 = arith.constant 1 : index
    %217 = vector.load %arg10[%c0_153, %c3_154, %c1_155] : memref<2x8x18xf32, #tpu.memory_space<vmem>>, vector<2x1x16xf32>
    %218 = vector.shape_cast %216 : vector<4x1xf32> to vector<1x4x1xf32>
    %219 = vector.broadcast %218 : vector<1x4x1xf32> to vector<2x4x16xf32>
    %220 = vector.broadcast %217 : vector<2x1x16xf32> to vector<2x4x16xf32>
    %221 = arith.mulf %219, %220 : vector<2x4x16xf32>
    %222 = arith.addf %214, %221 : vector<2x4x16xf32>
    %c11_156 = arith.constant 11 : index
    %c0_157 = arith.constant 0 : index
    %c0_158 = arith.constant 0 : index
    %223 = vector.load %arg3[%c11_156, %c0_157, %c0_158] : memref<24x4x1xf32, #tpu.memory_space<vmem>>, vector<1x4x1xf32>
    %224 = vector.shape_cast %223 : vector<1x4x1xf32> to vector<4x1xf32>
    %c0_159 = arith.constant 0 : index
    %c3_160 = arith.constant 3 : index
    %c2_161 = arith.constant 2 : index
    %225 = vector.load %arg10[%c0_159, %c3_160, %c2_161] : memref<2x8x18xf32, #tpu.memory_space<vmem>>, vector<2x1x16xf32>
    %226 = vector.shape_cast %224 : vector<4x1xf32> to vector<1x4x1xf32>
    %227 = vector.broadcast %226 : vector<1x4x1xf32> to vector<2x4x16xf32>
    %228 = vector.broadcast %225 : vector<2x1x16xf32> to vector<2x4x16xf32>
    %229 = arith.mulf %227, %228 : vector<2x4x16xf32>
    %230 = arith.addf %222, %229 : vector<2x4x16xf32>
    %c12 = arith.constant 12 : index
    %c0_162 = arith.constant 0 : index
    %c0_163 = arith.constant 0 : index
    %231 = vector.load %arg3[%c12, %c0_162, %c0_163] : memref<24x4x1xf32, #tpu.memory_space<vmem>>, vector<1x4x1xf32>
    %232 = vector.shape_cast %231 : vector<1x4x1xf32> to vector<4x1xf32>
    %c0_164 = arith.constant 0 : index
    %c4_165 = arith.constant 4 : index
    %c0_166 = arith.constant 0 : index
    %233 = vector.load %arg10[%c0_164, %c4_165, %c0_166] : memref<2x8x18xf32, #tpu.memory_space<vmem>>, vector<2x1x16xf32>
    %234 = vector.shape_cast %232 : vector<4x1xf32> to vector<1x4x1xf32>
    %235 = vector.broadcast %234 : vector<1x4x1xf32> to vector<2x4x16xf32>
    %236 = vector.broadcast %233 : vector<2x1x16xf32> to vector<2x4x16xf32>
    %237 = arith.mulf %235, %236 : vector<2x4x16xf32>
    %238 = arith.addf %230, %237 : vector<2x4x16xf32>
    %c13 = arith.constant 13 : index
    %c0_167 = arith.constant 0 : index
    %c0_168 = arith.constant 0 : index
    %239 = vector.load %arg3[%c13, %c0_167, %c0_168] : memref<24x4x1xf32, #tpu.memory_space<vmem>>, vector<1x4x1xf32>
    %240 = vector.shape_cast %239 : vector<1x4x1xf32> to vector<4x1xf32>
    %c0_169 = arith.constant 0 : index
    %c4_170 = arith.constant 4 : index
    %c1_171 = arith.constant 1 : index
    %241 = vector.load %arg10[%c0_169, %c4_170, %c1_171] : memref<2x8x18xf32, #tpu.memory_space<vmem>>, vector<2x1x16xf32>
    %242 = vector.shape_cast %240 : vector<4x1xf32> to vector<1x4x1xf32>
    %243 = vector.broadcast %242 : vector<1x4x1xf32> to vector<2x4x16xf32>
    %244 = vector.broadcast %241 : vector<2x1x16xf32> to vector<2x4x16xf32>
    %245 = arith.mulf %243, %244 : vector<2x4x16xf32>
    %246 = arith.addf %238, %245 : vector<2x4x16xf32>
    %c14 = arith.constant 14 : index
    %c0_172 = arith.constant 0 : index
    %c0_173 = arith.constant 0 : index
    %247 = vector.load %arg3[%c14, %c0_172, %c0_173] : memref<24x4x1xf32, #tpu.memory_space<vmem>>, vector<1x4x1xf32>
    %248 = vector.shape_cast %247 : vector<1x4x1xf32> to vector<4x1xf32>
    %c0_174 = arith.constant 0 : index
    %c4_175 = arith.constant 4 : index
    %c2_176 = arith.constant 2 : index
    %249 = vector.load %arg10[%c0_174, %c4_175, %c2_176] : memref<2x8x18xf32, #tpu.memory_space<vmem>>, vector<2x1x16xf32>
    %250 = vector.shape_cast %248 : vector<4x1xf32> to vector<1x4x1xf32>
    %251 = vector.broadcast %250 : vector<1x4x1xf32> to vector<2x4x16xf32>
    %252 = vector.broadcast %249 : vector<2x1x16xf32> to vector<2x4x16xf32>
    %253 = arith.mulf %251, %252 : vector<2x4x16xf32>
    %254 = arith.addf %246, %253 : vector<2x4x16xf32>
    %c15 = arith.constant 15 : index
    %c0_177 = arith.constant 0 : index
    %c0_178 = arith.constant 0 : index
    %255 = vector.load %arg3[%c15, %c0_177, %c0_178] : memref<24x4x1xf32, #tpu.memory_space<vmem>>, vector<1x4x1xf32>
    %256 = vector.shape_cast %255 : vector<1x4x1xf32> to vector<4x1xf32>
    %c0_179 = arith.constant 0 : index
    %c5_180 = arith.constant 5 : index
    %c0_181 = arith.constant 0 : index
    %257 = vector.load %arg10[%c0_179, %c5_180, %c0_181] : memref<2x8x18xf32, #tpu.memory_space<vmem>>, vector<2x1x16xf32>
    %258 = vector.shape_cast %256 : vector<4x1xf32> to vector<1x4x1xf32>
    %259 = vector.broadcast %258 : vector<1x4x1xf32> to vector<2x4x16xf32>
    %260 = vector.broadcast %257 : vector<2x1x16xf32> to vector<2x4x16xf32>
    %261 = arith.mulf %259, %260 : vector<2x4x16xf32>
    %262 = arith.addf %254, %261 : vector<2x4x16xf32>
    %c16 = arith.constant 16 : index
    %c0_182 = arith.constant 0 : index
    %c0_183 = arith.constant 0 : index
    %263 = vector.load %arg3[%c16, %c0_182, %c0_183] : memref<24x4x1xf32, #tpu.memory_space<vmem>>, vector<1x4x1xf32>
    %264 = vector.shape_cast %263 : vector<1x4x1xf32> to vector<4x1xf32>
    %c0_184 = arith.constant 0 : index
    %c5_185 = arith.constant 5 : index
    %c1_186 = arith.constant 1 : index
    %265 = vector.load %arg10[%c0_184, %c5_185, %c1_186] : memref<2x8x18xf32, #tpu.memory_space<vmem>>, vector<2x1x16xf32>
    %266 = vector.shape_cast %264 : vector<4x1xf32> to vector<1x4x1xf32>
    %267 = vector.broadcast %266 : vector<1x4x1xf32> to vector<2x4x16xf32>
    %268 = vector.broadcast %265 : vector<2x1x16xf32> to vector<2x4x16xf32>
    %269 = arith.mulf %267, %268 : vector<2x4x16xf32>
    %270 = arith.addf %262, %269 : vector<2x4x16xf32>
    %c17 = arith.constant 17 : index
    %c0_187 = arith.constant 0 : index
    %c0_188 = arith.constant 0 : index
    %271 = vector.load %arg3[%c17, %c0_187, %c0_188] : memref<24x4x1xf32, #tpu.memory_space<vmem>>, vector<1x4x1xf32>
    %272 = vector.shape_cast %271 : vector<1x4x1xf32> to vector<4x1xf32>
    %c0_189 = arith.constant 0 : index
    %c5_190 = arith.constant 5 : index
    %c2_191 = arith.constant 2 : index
    %273 = vector.load %arg10[%c0_189, %c5_190, %c2_191] : memref<2x8x18xf32, #tpu.memory_space<vmem>>, vector<2x1x16xf32>
    %274 = vector.shape_cast %272 : vector<4x1xf32> to vector<1x4x1xf32>
    %275 = vector.broadcast %274 : vector<1x4x1xf32> to vector<2x4x16xf32>
    %276 = vector.broadcast %273 : vector<2x1x16xf32> to vector<2x4x16xf32>
    %277 = arith.mulf %275, %276 : vector<2x4x16xf32>
    %278 = arith.addf %270, %277 : vector<2x4x16xf32>
    %c18 = arith.constant 18 : index
    %c0_192 = arith.constant 0 : index
    %c0_193 = arith.constant 0 : index
    %279 = vector.load %arg3[%c18, %c0_192, %c0_193] : memref<24x4x1xf32, #tpu.memory_space<vmem>>, vector<1x4x1xf32>
    %280 = vector.shape_cast %279 : vector<1x4x1xf32> to vector<4x1xf32>
    %c0_194 = arith.constant 0 : index
    %c6_195 = arith.constant 6 : index
    %c0_196 = arith.constant 0 : index
    %281 = vector.load %arg10[%c0_194, %c6_195, %c0_196] : memref<2x8x18xf32, #tpu.memory_space<vmem>>, vector<2x1x16xf32>
    %282 = vector.shape_cast %280 : vector<4x1xf32> to vector<1x4x1xf32>
    %283 = vector.broadcast %282 : vector<1x4x1xf32> to vector<2x4x16xf32>
    %284 = vector.broadcast %281 : vector<2x1x16xf32> to vector<2x4x16xf32>
    %285 = arith.mulf %283, %284 : vector<2x4x16xf32>
    %286 = arith.addf %278, %285 : vector<2x4x16xf32>
    %c19 = arith.constant 19 : index
    %c0_197 = arith.constant 0 : index
    %c0_198 = arith.constant 0 : index
    %287 = vector.load %arg3[%c19, %c0_197, %c0_198] : memref<24x4x1xf32, #tpu.memory_space<vmem>>, vector<1x4x1xf32>
    %288 = vector.shape_cast %287 : vector<1x4x1xf32> to vector<4x1xf32>
    %c0_199 = arith.constant 0 : index
    %c6_200 = arith.constant 6 : index
    %c1_201 = arith.constant 1 : index
    %289 = vector.load %arg10[%c0_199, %c6_200, %c1_201] : memref<2x8x18xf32, #tpu.memory_space<vmem>>, vector<2x1x16xf32>
    %290 = vector.shape_cast %288 : vector<4x1xf32> to vector<1x4x1xf32>
    %291 = vector.broadcast %290 : vector<1x4x1xf32> to vector<2x4x16xf32>
    %292 = vector.broadcast %289 : vector<2x1x16xf32> to vector<2x4x16xf32>
    %293 = arith.mulf %291, %292 : vector<2x4x16xf32>
    %294 = arith.addf %286, %293 : vector<2x4x16xf32>
    %c20 = arith.constant 20 : index
    %c0_202 = arith.constant 0 : index
    %c0_203 = arith.constant 0 : index
    %295 = vector.load %arg3[%c20, %c0_202, %c0_203] : memref<24x4x1xf32, #tpu.memory_space<vmem>>, vector<1x4x1xf32>
    %296 = vector.shape_cast %295 : vector<1x4x1xf32> to vector<4x1xf32>
    %c0_204 = arith.constant 0 : index
    %c6_205 = arith.constant 6 : index
    %c2_206 = arith.constant 2 : index
    %297 = vector.load %arg10[%c0_204, %c6_205, %c2_206] : memref<2x8x18xf32, #tpu.memory_space<vmem>>, vector<2x1x16xf32>
    %298 = vector.shape_cast %296 : vector<4x1xf32> to vector<1x4x1xf32>
    %299 = vector.broadcast %298 : vector<1x4x1xf32> to vector<2x4x16xf32>
    %300 = vector.broadcast %297 : vector<2x1x16xf32> to vector<2x4x16xf32>
    %301 = arith.mulf %299, %300 : vector<2x4x16xf32>
    %302 = arith.addf %294, %301 : vector<2x4x16xf32>
    %c21 = arith.constant 21 : index
    %c0_207 = arith.constant 0 : index
    %c0_208 = arith.constant 0 : index
    %303 = vector.load %arg3[%c21, %c0_207, %c0_208] : memref<24x4x1xf32, #tpu.memory_space<vmem>>, vector<1x4x1xf32>
    %304 = vector.shape_cast %303 : vector<1x4x1xf32> to vector<4x1xf32>
    %c0_209 = arith.constant 0 : index
    %c7_210 = arith.constant 7 : index
    %c0_211 = arith.constant 0 : index
    %305 = vector.load %arg10[%c0_209, %c7_210, %c0_211] : memref<2x8x18xf32, #tpu.memory_space<vmem>>, vector<2x1x16xf32>
    %306 = vector.shape_cast %304 : vector<4x1xf32> to vector<1x4x1xf32>
    %307 = vector.broadcast %306 : vector<1x4x1xf32> to vector<2x4x16xf32>
    %308 = vector.broadcast %305 : vector<2x1x16xf32> to vector<2x4x16xf32>
    %309 = arith.mulf %307, %308 : vector<2x4x16xf32>
    %310 = arith.addf %302, %309 : vector<2x4x16xf32>
    %c22 = arith.constant 22 : index
    %c0_212 = arith.constant 0 : index
    %c0_213 = arith.constant 0 : index
    %311 = vector.load %arg3[%c22, %c0_212, %c0_213] : memref<24x4x1xf32, #tpu.memory_space<vmem>>, vector<1x4x1xf32>
    %312 = vector.shape_cast %311 : vector<1x4x1xf32> to vector<4x1xf32>
    %c0_214 = arith.constant 0 : index
    %c7_215 = arith.constant 7 : index
    %c1_216 = arith.constant 1 : index
    %313 = vector.load %arg10[%c0_214, %c7_215, %c1_216] : memref<2x8x18xf32, #tpu.memory_space<vmem>>, vector<2x1x16xf32>
    %314 = vector.shape_cast %312 : vector<4x1xf32> to vector<1x4x1xf32>
    %315 = vector.broadcast %314 : vector<1x4x1xf32> to vector<2x4x16xf32>
    %316 = vector.broadcast %313 : vector<2x1x16xf32> to vector<2x4x16xf32>
    %317 = arith.mulf %315, %316 : vector<2x4x16xf32>
    %318 = arith.addf %310, %317 : vector<2x4x16xf32>
    %c23 = arith.constant 23 : index
    %c0_217 = arith.constant 0 : index
    %c0_218 = arith.constant 0 : index
    %319 = vector.load %arg3[%c23, %c0_217, %c0_218] : memref<24x4x1xf32, #tpu.memory_space<vmem>>, vector<1x4x1xf32>
    %320 = vector.shape_cast %319 : vector<1x4x1xf32> to vector<4x1xf32>
    %c0_219 = arith.constant 0 : index
    %c7_220 = arith.constant 7 : index
    %c2_221 = arith.constant 2 : index
    %321 = vector.load %arg10[%c0_219, %c7_220, %c2_221] : memref<2x8x18xf32, #tpu.memory_space<vmem>>, vector<2x1x16xf32>
    %322 = vector.shape_cast %320 : vector<4x1xf32> to vector<1x4x1xf32>
    %323 = vector.broadcast %322 : vector<1x4x1xf32> to vector<2x4x16xf32>
    %324 = vector.broadcast %321 : vector<2x1x16xf32> to vector<2x4x16xf32>
    %325 = arith.mulf %323, %324 : vector<2x4x16xf32>
    %326 = arith.addf %318, %325 : vector<2x4x16xf32>
    %cst_222 = arith.constant dense<0.000000e+00> : vector<2x4xf32>
    %327 = vector.multi_reduction <add>, %326, %cst_222 [2] : vector<2x4x16xf32> to vector<2x4xf32>
    %328 = vector.shape_cast %327 : vector<2x4xf32> to vector<2x4x1xf32>
    %cst_223 = arith.constant dense<0.000000e+00> : vector<4x1xf32>
    %329 = vector.multi_reduction <add>, %328, %cst_223 [0] : vector<2x4x1xf32> to vector<4x1xf32>
    %330 = vector.shape_cast %329 : vector<4x1xf32> to vector<1x4x1xf32>
    %cst_224 = arith.constant 3.125000e-02 : f32
    %331 = vector.broadcast %cst_224 : f32 to vector<1x4x1xf32>
    %332 = arith.mulf %330, %331 : vector<1x4x1xf32>
    %333 = vector.broadcast %332 : vector<1x4x1xf32> to vector<2x4x16xf32>
    %334 = arith.subf %326, %333 : vector<2x4x16xf32>
    %335 = arith.mulf %334, %334 : vector<2x4x16xf32>
    %cst_225 = arith.constant dense<0.000000e+00> : vector<2x4xf32>
    %336 = vector.multi_reduction <add>, %335, %cst_225 [2] : vector<2x4x16xf32> to vector<2x4xf32>
    %337 = vector.shape_cast %336 : vector<2x4xf32> to vector<2x4x1xf32>
    %cst_226 = arith.constant dense<0.000000e+00> : vector<4x1xf32>
    %338 = vector.multi_reduction <add>, %337, %cst_226 [0] : vector<2x4x1xf32> to vector<4x1xf32>
    %339 = vector.shape_cast %338 : vector<4x1xf32> to vector<1x4x1xf32>
    %cst_227 = arith.constant 3.125000e-02 : f32
    %340 = vector.broadcast %cst_227 : f32 to vector<1x4x1xf32>
    %341 = arith.mulf %339, %340 : vector<1x4x1xf32>
    %cst_228 = arith.constant 9.99999974E-6 : f32
    %342 = vector.broadcast %cst_228 : f32 to vector<1x4x1xf32>
    %343 = arith.addf %341, %342 : vector<1x4x1xf32>
    %344 = math.rsqrt %343 : vector<1x4x1xf32>
    %c0_229 = arith.constant 0 : index
    %c0_230 = arith.constant 0 : index
    %345 = vector.load %arg6[%c0_229, %c0_230] : memref<4x1xf32, #tpu.memory_space<vmem>>, vector<4x1xf32>
    %346 = vector.broadcast %344 : vector<1x4x1xf32> to vector<2x4x16xf32>
    %347 = arith.mulf %334, %346 : vector<2x4x16xf32>
    %348 = vector.shape_cast %345 : vector<4x1xf32> to vector<1x4x1xf32>
    %349 = vector.broadcast %348 : vector<1x4x1xf32> to vector<2x4x16xf32>
    %350 = arith.mulf %349, %347 : vector<2x4x16xf32>
    %c0_231 = arith.constant 0 : index
    %c0_232 = arith.constant 0 : index
    %351 = vector.load %arg7[%c0_231, %c0_232] : memref<4x1xf32, #tpu.memory_space<vmem>>, vector<4x1xf32>
    %352 = vector.shape_cast %351 : vector<4x1xf32> to vector<1x4x1xf32>
    %353 = vector.broadcast %352 : vector<1x4x1xf32> to vector<2x4x16xf32>
    %354 = arith.addf %350, %353 : vector<2x4x16xf32>
    %cst_233 = arith.constant 0.000000e+00 : f32
    %355 = vector.broadcast %cst_233 : f32 to vector<2x4x16xf32>
    %356 = arith.maximumf %354, %355 : vector<2x4x16xf32>
    %c0_234 = arith.constant 0 : index
    %c0_235 = arith.constant 0 : index
    %c0_236 = arith.constant 0 : index
    %357 = vector.load %arg1[%c0_234, %c0_235, %c0_236] : memref<2x4x16xf32, #tpu.memory_space<vmem>>, vector<2x4x16xf32>
    %358 = arith.addf %356, %357 : vector<2x4x16xf32>
    %c0_237 = arith.constant 0 : index
    %c0_238 = arith.constant 0 : index
    %c0_239 = arith.constant 0 : index
    %359 = vector.load %arg8[%c0_237, %c0_238, %c0_239] : memref<2x4x16xf32, #tpu.memory_space<vmem>>, vector<2x4x16xf32>
    tpu.vector_store %arg8[%c0_237, %c0_238, %c0_239], %358 {strides = array<i32>} : memref<2x4x16xf32, #tpu.memory_space<vmem>>, vector<2x4x16xf32>,
    return
  }
  func.func @transform_0(%arg0: i32) -> (i32, i32, i32) {
    %c0_i32 = arith.constant 0 : i32
    %c0_i32_0 = arith.constant 0 : i32
    %c0_i32_1 = arith.constant 0 : i32
    %c0_i32_2 = arith.constant 0 : i32
    return %c0_i32, %c0_i32_0, %c0_i32_1 : i32, i32, i32
  }
  func.func @transform_1(%arg0: i32) -> (i32, i32, i32) {
    %c0_i32 = arith.constant 0 : i32
    %c0_i32_0 = arith.constant 0 : i32
    %c0_i32_1 = arith.constant 0 : i32
    %c0_i32_2 = arith.constant 0 : i32
    return %c0_i32, %c0_i32_0, %c0_i32_1 : i32, i32, i32
  }
  func.func @transform_2(%arg0: i32) -> (i32, i32, i32) {
    %c0_i32 = arith.constant 0 : i32
    %c0_i32_0 = arith.constant 0 : i32
    %c0_i32_1 = arith.constant 0 : i32
    %c0_i32_2 = arith.constant 0 : i32
    return %c0_i32, %c0_i32_0, %c0_i32_1 : i32, i32, i32
  }
  func.func @transform_3(%arg0: i32) -> (i32, i32) {
    %c0_i32 = arith.constant 0 : i32
    %c0_i32_0 = arith.constant 0 : i32
    %c0_i32_1 = arith.constant 0 : i32
    return %c0_i32, %c0_i32_0 : i32, i32
  }
  func.func @transform_4(%arg0: i32) -> (i32, i32) {
    %c0_i32 = arith.constant 0 : i32
    %c0_i32_0 = arith.constant 0 : i32
    %c0_i32_1 = arith.constant 0 : i32
    return %c0_i32, %c0_i32_0 : i32, i32
  }
  func.func @transform_5(%arg0: i32) -> (i32, i32) {
    %c0_i32 = arith.constant 0 : i32
    %c0_i32_0 = arith.constant 0 : i32
    %c0_i32_1 = arith.constant 0 : i32
    return %c0_i32, %c0_i32_0 : i32, i32
  }
  func.func @transform_6(%arg0: i32) -> (i32, i32) {
    %c0_i32 = arith.constant 0 : i32
    %c0_i32_0 = arith.constant 0 : i32
    %c0_i32_1 = arith.constant 0 : i32
    return %c0_i32, %c0_i32_0 : i32, i32
  }
  func.func @transform_7(%arg0: i32) -> (i32, i32, i32) {
    %c0_i32 = arith.constant 0 : i32
    %c0_i32_0 = arith.constant 0 : i32
    %c0_i32_1 = arith.constant 0 : i32
    %c0_i32_2 = arith.constant 0 : i32
    return %c0_i32, %c0_i32_0, %c0_i32_1 : i32, i32, i32
  }
}

</mosaic_0001>

<llo_original>
// kernel: tpu_custom_call.1
$region0: #{tpu_custom_call.1}
  #allocation0 [shape = 'u32[]', space=smem, size = 0x4, offset = 0x4, fixed_abs, tag = 'smem constant byte address 0x4 - core index']
  #allocation1 [shape = 'u32[144,128]{1,0:T(1,128)}', space=vmem, size = 0x12000, scoped, tag = 'internal scratch']
  #allocation2 [shape = 'f32[2,4,18]{2,1,0:T(4,128)}', space=vmem, size = 0x1000, scoped, tag = 'scratch operand']
  #allocation3 [shape = 'f32[2,8,18]{2,1,0:T(8,128)}', space=vmem, size = 0x2000, scoped, tag = 'scratch operand']
  %s0 = inlined_call_operand.vmem [shape: f32[2,4,16], index: 0, kind: input, shape index: {}]
  %s1 = inlined_call_operand.vmem [shape: f32[12,8,1], index: 1, kind: input, shape index: {}]
  %s2 = inlined_call_operand.vmem [shape: f32[24,4,1], index: 2, kind: input, shape index: {}]
  %s3 = inlined_call_operand.vmem [shape: f32[8,1], index: 3, kind: input, shape index: {}]
  %s4 = inlined_call_operand.vmem [shape: f32[8,1], index: 4, kind: input, shape index: {}]
  %s5 = inlined_call_operand.vmem [shape: f32[4,1], index: 5, kind: input, shape index: {}]
  %s6 = inlined_call_operand.vmem [shape: f32[4,1], index: 6, kind: input, shape index: {}]
  %s7 = inlined_call_operand.hbm [shape: f32[2,4,16], index: 7, kind: output, shape index: {}]
  %s8 = sld [smem:[#allocation0]]
  $region38: #{tpu_custom_call.1} parent=0
    _
  %s10 = ssub.s32 1, %s8
  %s11 = scalar_select 0, %s10, %s8
  $region1: #{tpu_custom_call.1} parent=0
    #allocation4 [shape = 'u8[4096]{0}', space=vmem, size = 0x1000, scoped, tag = 'output window, operand 0, single buffered']
    #allocation5 [shape = 's32[1]{0}', space=sflag, size = 0x4, scoped, tag = 'scoped memory for tpu_custom_call.1']
    %12 = vsyncpa [#allocation5], 0
    // Predicated region
    $region2: #{tpu_custom_call.1} parent=1 // pred_check
      _
    $region3: #{tpu_custom_call.1} parent=1 // pred_check_branch
      %14 = sbr.rel (0) target = $region5
    $region4: #{tpu_custom_call.1} parent=1 // pred_region
      _
    $region5: #{tpu_custom_call.1} parent=1 // pred_fallthru
      _
    // Predicated region
    $region6: #{tpu_custom_call.1} parent=1 // pred_check
      _
    $region7: #{tpu_custom_call.1} parent=1 // pred_check_branch
      %16 = sbr.rel (0) target = $region9
    $region8: #{tpu_custom_call.1} parent=1 // pred_region
      _
    $region9: #{tpu_custom_call.1} parent=1 // pred_fallthru
      _
    // Predicated region
    $region10: #{tpu_custom_call.1} parent=1 // pred_check
      _
    $region11: #{tpu_custom_call.1} parent=1 // pred_check_branch
      %18 = sbr.rel (0) target = $region13
    $region12: #{tpu_custom_call.1} parent=1 // pred_region
      _
    $region13: #{tpu_custom_call.1} parent=1 // pred_fallthru
      _
    // Predicated region
    $region14: #{tpu_custom_call.1} parent=1 // pred_check
      _
    $region15: #{tpu_custom_call.1} parent=1 // pred_check_branch
      %20 = sbr.rel (0) target = $region17
    $region16: #{tpu_custom_call.1} parent=1 // pred_region
      _
    $region17: #{tpu_custom_call.1} parent=1 // pred_fallthru
      _
    // Predicated region
    $region18: #{tpu_custom_call.1} parent=1 // pred_check
      _
    $region19: #{tpu_custom_call.1} parent=1 // pred_check_branch
      %22 = sbr.rel (0) target = $region21
    $region20: #{tpu_custom_call.1} parent=1 // pred_region
      _
    $region21: #{tpu_custom_call.1} parent=1 // pred_fallthru
      _
    // Predicated region
    $region22: #{tpu_custom_call.1} parent=1 // pred_check
      _
    $region23: #{tpu_custom_call.1} parent=1 // pred_check_branch
      %24 = sbr.rel (0) target = $region25
    $region24: #{tpu_custom_call.1} parent=1 // pred_region
      _
    $region25: #{tpu_custom_call.1} parent=1 // pred_fallthru
      _
    // Predicated region
    $region26: #{tpu_custom_call.1} parent=1 // pred_check
      _
    $region27: #{tpu_custom_call.1} parent=1 // pred_check_branch
      %26 = sbr.rel (0) target = $region29
    $region28: #{tpu_custom_call.1} parent=1 // pred_region
      _
    $region29: #{tpu_custom_call.1} parent=1 // pred_fallthru
      _
    %vm27 = vcmask 142336
    %28 = vst.msk [vmem:[#allocation2] sm:$0xf] %vm27, 0.0
    %29 = vst.msk [vmem:[#allocation2 + $0x4] sm:$0xf] %vm27, 0.0
    %v30 = vld [vmem:[%s0] sm:$0xf]
    %v31 = vld [vmem:[%s0 + $0x4] sm:$0xf]
    %34 = vrot.lane.b32.xlu0 %v30, 1
    %v35 = vpop.permute.xlu0 %34
    %36 = vrot.lane.b32.xlu0 %v31, 1
    %v37 = vpop.permute.xlu0 %36
    %vm40 = vcmask 134152
    %41 = vst.msk [vmem:[#allocation2] sm:$0xf] %vm40, %v35
    %42 = vst.msk [vmem:[#allocation2 + $0x4] sm:$0xf] %vm40, %v37
    %v43 = vld [vmem:[%s1] sm:$0xff]
    %v44 = vld [vmem:[#allocation2] sm:$0x1]
    %v45 = vld [vmem:[#allocation2 + $0x4] sm:$0x1]
    %47 = vset.pattern.permute.xlu0 0
    %48 = vperm.xlu0 %47, %v43
    %v49 = vpop.permute.xlu0 %48
    %v51 = vlaneseq
    %v52 = vshrl.u32 %v51, 7
    %v53 = vsub.s32 0, %v52
    %v54 = vrot.slane %v44, %v53
    %v55 = vlaneseq
    %v56 = vshrl.u32 %v55, 7
    %v57 = vsub.s32 0, %v56
    %v58 = vrot.slane %v45, %v57
    %v59 = vmul.f32 %v49, %v54
    %v60 = vmul.f32 %v49, %v58
    %v61 = vadd.f32 %v59, 0.0
    %v62 = vadd.f32 %v60, 0.0
    %s63 = scalar_lea.vmem %s1, 8
    %v64 = vld [vmem:[%s63] sm:$0xff]
    %66 = vset.pattern.permute.xlu0 0
    %67 = vperm.xlu0 %66, %v64
    %v68 = vpop.permute.xlu0 %67
    %v70 = vmul.f32 %v68, %v54
    %v71 = vmul.f32 %v68, %v58
    %74 = vrot.lane.b32.xlu0 %v70, 127
    %v75 = vpop.permute.xlu0 %74
    %76 = vrot.lane.b32.xlu0 %v71, 127
    %v77 = vpop.permute.xlu0 %76
    %v80 = vadd.f32 %v61, %v75
    %v81 = vadd.f32 %v62, %v77
    %s82 = scalar_lea.vmem %s1, 16
    %v83 = vld [vmem:[%s82] sm:$0xff]
    %85 = vset.pattern.permute.xlu0 0
    %86 = vperm.xlu0 %85, %v83
    %v87 = vpop.permute.xlu0 %86
    %v89 = vmul.f32 %v87, %v54
    %v90 = vmul.f32 %v87, %v58
    %93 = vrot.lane.b32.xlu0 %v89, 126
    %v94 = vpop.permute.xlu0 %93
    %95 = vrot.lane.b32.xlu0 %v90, 126
    %v96 = vpop.permute.xlu0 %95
    %v99 = vadd.f32 %v80, %v94
    %v100 = vadd.f32 %v81, %v96
    %s101 = scalar_lea.vmem %s1, 24
    %v102 = vld [vmem:[%s101] sm:$0xff]
    %v103 = vld [vmem:[#allocation2 + $0x1] sm:$0x1]
    %v104 = vld [vmem:[#allocation2 + $0x5] sm:$0x1]
    %106 = vset.pattern.permute.xlu0 0
    %107 = vperm.xlu0 %106, %v102
    %v108 = vpop.permute.xlu0 %107
    %v110 = vlaneseq
    %v111 = vshrl.u32 %v110, 7
    %v112 = vsub.s32 0, %v111
    %v113 = vrot.slane %v103, %v112
    %v114 = vlaneseq
    %v115 = vshrl.u32 %v114, 7
    %v116 = vsub.s32 0, %v115
    %v117 = vrot.slane %v104, %v116
    %v118 = vmul.f32 %v108, %v113
    %v119 = vmul.f32 %v108, %v117
    %v120 = vadd.f32 %v99, %v118
    %v121 = vadd.f32 %v100, %v119
    %s122 = scalar_lea.vmem %s1, 32
    %v123 = vld [vmem:[%s122] sm:$0xff]
    %125 = vset.pattern.permute.xlu0 0
    %126 = vperm.xlu0 %125, %v123
    %v127 = vpop.permute.xlu0 %126
    %v129 = vmul.f32 %v127, %v113
    %v130 = vmul.f32 %v127, %v117
    %133 = vrot.lane.b32.xlu0 %v129, 127
    %v134 = vpop.permute.xlu0 %133
    %135 = vrot.lane.b32.xlu0 %v130, 127
    %v136 = vpop.permute.xlu0 %135
    %v139 = vadd.f32 %v120, %v134
    %v140 = vadd.f32 %v121, %v136
    %s141 = scalar_lea.vmem %s1, 40
    %v142 = vld [vmem:[%s141] sm:$0xff]
    %144 = vset.pattern.permute.xlu0 0
    %145 = vperm.xlu0 %144, %v142
    %v146 = vpop.permute.xlu0 %145
    %v148 = vmul.f32 %v146, %v113
    %v149 = vmul.f32 %v146, %v117
    %152 = vrot.lane.b32.xlu0 %v148, 126
    %v153 = vpop.permute.xlu0 %152
    %154 = vrot.lane.b32.xlu0 %v149, 126
    %v155 = vpop.permute.xlu0 %154
    %v158 = vadd.f32 %v139, %v153
    %v159 = vadd.f32 %v140, %v155
    %s160 = scalar_lea.vmem %s1, 48
    %v161 = vld [vmem:[%s160] sm:$0xff]
    %v162 = vld [vmem:[#allocation2 + $0x2] sm:$0x1]
    %v163 = vld [vmem:[#allocation2 + $0x6] sm:$0x1]
    %165 = vset.pattern.permute.xlu0 0
    %166 = vperm.xlu0 %165, %v161
    %v167 = vpop.permute.xlu0 %166
    %v169 = vlaneseq
    %v170 = vshrl.u32 %v169, 7
    %v171 = vsub.s32 0, %v170
    %v172 = vrot.slane %v162, %v171
    %v173 = vlaneseq
    %v174 = vshrl.u32 %v173, 7
    %v175 = vsub.s32 0, %v174
    %v176 = vrot.slane %v163, %v175
    %v177 = vmul.f32 %v167, %v172
    %v178 = vmul.f32 %v167, %v176
    %v179 = vadd.f32 %v158, %v177
    %v180 = vadd.f32 %v159, %v178
    %s181 = scalar_lea.vmem %s1, 56
    %v182 = vld [vmem:[%s181] sm:$0xff]
    %184 = vset.pattern.permute.xlu0 0
    %185 = vperm.xlu0 %184, %v182
    %v186 = vpop.permute.xlu0 %185
    %v188 = vmul.f32 %v186, %v172
    %v189 = vmul.f32 %v186, %v176
    %192 = vrot.lane.b32.xlu0 %v188, 127
    %v193 = vpop.permute.xlu0 %192
    %194 = vrot.lane.b32.xlu0 %v189, 127
    %v195 = vpop.permute.xlu0 %194
    %v198 = vadd.f32 %v179, %v193
    %v199 = vadd.f32 %v180, %v195
    %s200 = scalar_lea.vmem %s1, 64
    %v201 = vld [vmem:[%s200] sm:$0xff]
    %203 = vset.pattern.permute.xlu0 0
    %204 = vperm.xlu0 %203, %v201
    %v205 = vpop.permute.xlu0 %204
    %v207 = vmul.f32 %v205, %v172
    %v208 = vmul.f32 %v205, %v176
    %211 = vrot.lane.b32.xlu0 %v207, 126
    %v212 = vpop.permute.xlu0 %211
    %213 = vrot.lane.b32.xlu0 %v208, 126
    %v214 = vpop.permute.xlu0 %213
    %v217 = vadd.f32 %v198, %v212
    %v218 = vadd.f32 %v199, %v214
    %s219 = scalar_lea.vmem %s1, 72
    %v220 = vld [vmem:[%s219] sm:$0xff]
    %v221 = vld [vmem:[#allocation2 + $0x3] sm:$0x1]
    %v222 = vld [vmem:[#allocation2 + $0x7] sm:$0x1]
    %224 = vset.pattern.permute.xlu0 0
    %225 = vperm.xlu0 %224, %v220
    %v226 = vpop.permute.xlu0 %225
    %v228 = vlaneseq
    %v229 = vshrl.u32 %v228, 7
    %v230 = vsub.s32 0, %v229
    %v231 = vrot.slane %v221, %v230
    %v232 = vlaneseq
    %v233 = vshrl.u32 %v232, 7
    %v234 = vsub.s32 0, %v233
    %v235 = vrot.slane %v222, %v234
    %v236 = vmul.f32 %v226, %v231
    %v237 = vmul.f32 %v226, %v235
    %v238 = vadd.f32 %v217, %v236
    %v239 = vadd.f32 %v218, %v237
    %s240 = scalar_lea.vmem %s1, 80
    %v241 = vld [vmem:[%s240] sm:$0xff]
    %243 = vset.pattern.permute.xlu0 0
    %244 = vperm.xlu0 %243, %v241
    %v245 = vpop.permute.xlu0 %244
    %v247 = vmul.f32 %v245, %v231
    %v248 = vmul.f32 %v245, %v235
    %251 = vrot.lane.b32.xlu0 %v247, 127
    %v252 = vpop.permute.xlu0 %251
    %253 = vrot.lane.b32.xlu0 %v248, 127
    %v254 = vpop.permute.xlu0 %253
    %v257 = vadd.f32 %v238, %v252
    %v258 = vadd.f32 %v239, %v254
    %s259 = scalar_lea.vmem %s1, 88
    %v260 = vld [vmem:[%s259] sm:$0xff]
    %262 = vset.pattern.permute.xlu0 0
    %263 = vperm.xlu0 %262, %v260
    %v264 = vpop.permute.xlu0 %263
    %v266 = vmul.f32 %v264, %v231
    %v267 = vmul.f32 %v264, %v235
    %270 = vrot.lane.b32.xlu0 %v266, 126
    %v271 = vpop.permute.xlu0 %270
    %272 = vrot.lane.b32.xlu0 %v267, 126
    %v273 = vpop.permute.xlu0 %272
    %v276 = vadd.f32 %v257, %v271
    %v277 = vadd.f32 %v258, %v273
    %vm278 = vcmask 130048
    %v279 = vsel %vm278, %v276, 0.0
    %280 = vadd.xlane.f32.xlu0 %v279
    %v281 = vpop.xlane.xlu0 %280
    %v282 = vsel %vm278, %v277, 0.0
    %283 = vadd.xlane.f32.xlu0 %v282
    %v284 = vpop.xlane.xlu0 %283
    %v285 = vadd.f32 %v281, %v284
    %v286 = vmul.f32 %v285, 0.03125
    %v287 = vsub.f32 %v276, %v286
    %v288 = vsub.f32 %v277, %v286
    %v289 = vmul.f32 %v287, %v287
    %v290 = vmul.f32 %v288, %v288
    %v291 = vsel %vm278, %v289, 0.0
    %292 = vadd.xlane.f32.xlu0 %v291
    %v293 = vpop.xlane.xlu0 %292
    %v294 = vsel %vm278, %v290, 0.0
    %295 = vadd.xlane.f32.xlu0 %v294
    %v296 = vpop.xlane.xlu0 %295
    %v297 = vadd.f32 %v293, %v296
    %v298 = vmul.f32 %v297, 0.03125
    %v299 = vadd.f32 %v298, 1e-05
    %v300 = vrsqrt.pop %v299
    %v301 = vld [vmem:[%s3] sm:$0xff]
    %v302 = vmul.f32 %v287, %v300
    %v303 = vmul.f32 %v288, %v300
    %305 = vset.pattern.permute.xlu0 0
    %306 = vperm.xlu0 %305, %v301
    %v307 = vpop.permute.xlu0 %306
    %v309 = vmul.f32 %v307, %v302
    %v310 = vmul.f32 %v307, %v303
    %v311 = vld [vmem:[%s4] sm:$0xff]
    %313 = vset.pattern.permute.xlu0 0
    %314 = vperm.xlu0 %313, %v311
    %v315 = vpop.permute.xlu0 %314
    %v317 = vadd.f32 %v309, %v315
    %v318 = vadd.f32 %v310, %v315
    %v319 = vmax.f32 %v317, 0.0
    %v320 = vmax.f32 %v318, 0.0
    %vm321 = vcmask 146432
    %322 = vst.msk [vmem:[#allocation3] sm:$0xff] %vm321, 0.0
    %323 = vst.msk [vmem:[#allocation3 + $0x8] sm:$0xff] %vm321, 0.0
    %326 = vrot.lane.b32.xlu0 %v319, 1
    %v327 = vpop.permute.xlu0 %326
    %328 = vrot.lane.b32.xlu0 %v320, 1
    %v329 = vpop.permute.xlu0 %328
    %vm332 = vcmask 138248
    %333 = vst.msk [vmem:[#allocation3] sm:$0xff] %vm332, %v327
    %334 = vst.msk [vmem:[#allocation3 + $0x8] sm:$0xff] %vm332, %v329
    %v335 = vld [vmem:[%s2] sm:$0xf]
    %v336 = vld [vmem:[#allocation3] sm:$0x1]
    %v337 = vld [vmem:[#allocation3 + $0x8] sm:$0x1]
    %339 = vset.pattern.permute.xlu0 0
    %340 = vperm.xlu0 %339, %v335
    %v341 = vpop.permute.xlu0 %340
    %v343 = vlaneseq
    %v344 = vshrl.u32 %v343, 7
    %v345 = vsub.s32 0, %v344
    %v346 = vrot.slane %v336, %v345
    %v347 = vlaneseq
    %v348 = vshrl.u32 %v347, 7
    %v349 = vsub.s32 0, %v348
    %v350 = vrot.slane %v337, %v349
    %v351 = vmul.f32 %v341, %v346
    %v352 = vmul.f32 %v341, %v350
    %v353 = vadd.f32 %v351, 0.0
    %v354 = vadd.f32 %v352, 0.0
    %s355 = scalar_lea.vmem %s2, 4
    %v356 = vld [vmem:[%s355] sm:$0xf]
    %358 = vset.pattern.permute.xlu0 0
    %359 = vperm.xlu0 %358, %v356
    %v360 = vpop.permute.xlu0 %359
    %v362 = vmul.f32 %v360, %v346
    %v363 = vmul.f32 %v360, %v350
    %366 = vrot.lane.b32.xlu0 %v362, 127
    %v367 = vpop.permute.xlu0 %366
    %368 = vrot.lane.b32.xlu0 %v363, 127
    %v369 = vpop.permute.xlu0 %368
    %v372 = vadd.f32 %v353, %v367
    %v373 = vadd.f32 %v354, %v369
    %s374 = scalar_lea.vmem %s2, 8
    %v375 = vld [vmem:[%s374] sm:$0xf]
    %377 = vset.pattern.permute.xlu0 0
    %378 = vperm.xlu0 %377, %v375
    %v379 = vpop.permute.xlu0 %378
    %v381 = vmul.f32 %v379, %v346
    %v382 = vmul.f32 %v379, %v350
    %385 = vrot.lane.b32.xlu0 %v381, 126
    %v386 = vpop.permute.xlu0 %385
    %387 = vrot.lane.b32.xlu0 %v382, 126
    %v388 = vpop.permute.xlu0 %387
    %v391 = vadd.f32 %v372, %v386
    %v392 = vadd.f32 %v373, %v388
    %s393 = scalar_lea.vmem %s2, 12
    %v394 = vld [vmem:[%s393] sm:$0xf]
    %v395 = vld [vmem:[#allocation3 + $0x1] sm:$0x1]
    %v396 = vld [vmem:[#allocation3 + $0x9] sm:$0x1]
    %398 = vset.pattern.permute.xlu0 0
    %399 = vperm.xlu0 %398, %v394
    %v400 = vpop.permute.xlu0 %399
    %v402 = vlaneseq
    %v403 = vshrl.u32 %v402, 7
    %v404 = vsub.s32 0, %v403
    %v405 = vrot.slane %v395, %v404
    %v406 = vlaneseq
    %v407 = vshrl.u32 %v406, 7
    %v408 = vsub.s32 0, %v407
    %v409 = vrot.slane %v396, %v408
    %v410 = vmul.f32 %v400, %v405
    %v411 = vmul.f32 %v400, %v409
    %v412 = vadd.f32 %v391, %v410
    %v413 = vadd.f32 %v392, %v411
    %s414 = scalar_lea.vmem %s2, 16
    %v415 = vld [vmem:[%s414] sm:$0xf]
    %417 = vset.pattern.permute.xlu0 0
    %418 = vperm.xlu0 %417, %v415
    %v419 = vpop.permute.xlu0 %418
    %v421 = vmul.f32 %v419, %v405
    %v422 = vmul.f32 %v419, %v409
    %425 = vrot.lane.b32.xlu0 %v421, 127
    %v426 = vpop.permute.xlu0 %425
    %427 = vrot.lane.b32.xlu0 %v422, 127
    %v428 = vpop.permute.xlu0 %427
    %v431 = vadd.f32 %v412, %v426
    %v432 = vadd.f32 %v413, %v428
    %s433 = scalar_lea.vmem %s2, 20
    %v434 = vld [vmem:[%s433] sm:$0xf]
    %436 = vset.pattern.permute.xlu0 0
    %437 = vperm.xlu0 %436, %v434
    %v438 = vpop.permute.xlu0 %437
    %v440 = vmul.f32 %v438, %v405
    %v441 = vmul.f32 %v438, %v409
    %444 = vrot.lane.b32.xlu0 %v440, 126
    %v445 = vpop.permute.xlu0 %444
    %446 = vrot.lane.b32.xlu0 %v441, 126
    %v447 = vpop.permute.xlu0 %446
    %v450 = vadd.f32 %v431, %v445
    %v451 = vadd.f32 %v432, %v447
    %s452 = scalar_lea.vmem %s2, 24
    %v453 = vld [vmem:[%s452] sm:$0xf]
    %v454 = vld [vmem:[#allocation3 + $0x2] sm:$0x1]
    %v455 = vld [vmem:[#allocation3 + $0xa] sm:$0x1]
    %457 = vset.pattern.permute.xlu0 0
    %458 = vperm.xlu0 %457, %v453
    %v459 = vpop.permute.xlu0 %458
    %v461 = vlaneseq
    %v462 = vshrl.u32 %v461, 7
    %v463 = vsub.s32 0, %v462
    %v464 = vrot.slane %v454, %v463
    %v465 = vlaneseq
    %v466 = vshrl.u32 %v465, 7
    %v467 = vsub.s32 0, %v466
    %v468 = vrot.slane %v455, %v467
    %v469 = vmul.f32 %v459, %v464
    %v470 = vmul.f32 %v459, %v468
    %v471 = vadd.f32 %v450, %v469
    %v472 = vadd.f32 %v451, %v470
    %s473 = scalar_lea.vmem %s2, 28
    %v474 = vld [vmem:[%s473] sm:$0xf]
    %476 = vset.pattern.permute.xlu0 0
    %477 = vperm.xlu0 %476, %v474
    %v478 = vpop.permute.xlu0 %477
    %v480 = vmul.f32 %v478, %v464
    %v481 = vmul.f32 %v478, %v468
    %484 = vrot.lane.b32.xlu0 %v480, 127
    %v485 = vpop.permute.xlu0 %484
    %486 = vrot.lane.b32.xlu0 %v481, 127
    %v487 = vpop.permute.xlu0 %486
    %v490 = vadd.f32 %v471, %v485
    %v491 = vadd.f32 %v472, %v487
    %s492 = scalar_lea.vmem %s2, 32
    %v493 = vld [vmem:[%s492] sm:$0xf]
    %495 = vset.pattern.permute.xlu0 0
    %496 = vperm.xlu0 %495, %v493
    %v497 = vpop.permute.xlu0 %496
    %v499 = vmul.f32 %v497, %v464
    %v500 = vmul.f32 %v497, %v468
    %503 = vrot.lane.b32.xlu0 %v499, 126
    %v504 = vpop.permute.xlu0 %503
    %505 = vrot.lane.b32.xlu0 %v500, 126
    %v506 = vpop.permute.xlu0 %505
    %v509 = vadd.f32 %v490, %v504
    %v510 = vadd.f32 %v491, %v506
    %s511 = scalar_lea.vmem %s2, 36
    %v512 = vld [vmem:[%s511] sm:$0xf]
    %v513 = vld [vmem:[#allocation3 + $0x3] sm:$0x1]
    %v514 = vld [vmem:[#allocation3 + $0xb] sm:$0x1]
    %516 = vset.pattern.permute.xlu0 0
    %517 = vperm.xlu0 %516, %v512
    %v518 = vpop.permute.xlu0 %517
    %v520 = vlaneseq
    %v521 = vshrl.u32 %v520, 7
    %v522 = vsub.s32 0, %v521
    %v523 = vrot.slane %v513, %v522
    %v524 = vlaneseq
    %v525 = vshrl.u32 %v524, 7
    %v526 = vsub.s32 0, %v525
    %v527 = vrot.slane %v514, %v526
    %v528 = vmul.f32 %v518, %v523
    %v529 = vmul.f32 %v518, %v527
    %v530 = vadd.f32 %v509, %v528
    %v531 = vadd.f32 %v510, %v529
    %s532 = scalar_lea.vmem %s2, 40
    %v533 = vld [vmem:[%s532] sm:$0xf]
    %535 = vset.pattern.permute.xlu0 0
    %536 = vperm.xlu0 %535, %v533
    %v537 = vpop.permute.xlu0 %536
    %v539 = vmul.f32 %v537, %v523
    %v540 = vmul.f32 %v537, %v527
    %543 = vrot.lane.b32.xlu0 %v539, 127
    %v544 = vpop.permute.xlu0 %543
    %545 = vrot.lane.b32.xlu0 %v540, 127
    %v546 = vpop.permute.xlu0 %545
    %v549 = vadd.f32 %v530, %v544
    %v550 = vadd.f32 %v531, %v546
    %s551 = scalar_lea.vmem %s2, 44
    %v552 = vld [vmem:[%s551] sm:$0xf]
    %554 = vset.pattern.permute.xlu0 0
    %555 = vperm.xlu0 %554, %v552
    %v556 = vpop.permute.xlu0 %555
    %v558 = vmul.f32 %v556, %v523
    %v559 = vmul.f32 %v556, %v527
    %562 = vrot.lane.b32.xlu0 %v558, 126
    %v563 = vpop.permute.xlu0 %562
    %564 = vrot.lane.b32.xlu0 %v559, 126
    %v565 = vpop.permute.xlu0 %564
    %v568 = vadd.f32 %v549, %v563
    %v569 = vadd.f32 %v550, %v565
    %s570 = scalar_lea.vmem %s2, 48
    %v571 = vld [vmem:[%s570] sm:$0xf]
    %v572 = vld [vmem:[#allocation3 + $0x4] sm:$0x1]
    %v573 = vld [vmem:[#allocation3 + $0xc] sm:$0x1]
    %575 = vset.pattern.permute.xlu0 0
    %576 = vperm.xlu0 %575, %v571
    %v577 = vpop.permute.xlu0 %576
    %v579 = vlaneseq
    %v580 = vshrl.u32 %v579, 7
    %v581 = vsub.s32 0, %v580
    %v582 = vrot.slane %v572, %v581
    %v583 = vlaneseq
    %v584 = vshrl.u32 %v583, 7
    %v585 = vsub.s32 0, %v584
    %v586 = vrot.slane %v573, %v585
    %v587 = vmul.f32 %v577, %v582
    %v588 = vmul.f32 %v577, %v586
    %v589 = vadd.f32 %v568, %v587
    %v590 = vadd.f32 %v569, %v588
    %s591 = scalar_lea.vmem %s2, 52
    %v592 = vld [vmem:[%s591] sm:$0xf]
    %594 = vset.pattern.permute.xlu0 0
    %595 = vperm.xlu0 %594, %v592
    %v596 = vpop.permute.xlu0 %595
    %v598 = vmul.f32 %v596, %v582
    %v599 = vmul.f32 %v596, %v586
    %602 = vrot.lane.b32.xlu0 %v598, 127
    %v603 = vpop.permute.xlu0 %602
    %604 = vrot.lane.b32.xlu0 %v599, 127
    %v605 = vpop.permute.xlu0 %604
    %v608 = vadd.f32 %v589, %v603
    %v609 = vadd.f32 %v590, %v605
    %s610 = scalar_lea.vmem %s2, 56
    %v611 = vld [vmem:[%s610] sm:$0xf]
    %613 = vset.pattern.permute.xlu0 0
    %614 = vperm.xlu0 %613, %v611
    %v615 = vpop.permute.xlu0 %614
    %v617 = vmul.f32 %v615, %v582
    %v618 = vmul.f32 %v615, %v586
    %621 = vrot.lane.b32.xlu0 %v617, 126
    %v622 = vpop.permute.xlu0 %621
    %623 = vrot.lane.b32.xlu0 %v618, 126
    %v624 = vpop.permute.xlu0 %623
    %v627 = vadd.f32 %v608, %v622
    %v628 = vadd.f32 %v609, %v624
    %s629 = scalar_lea.vmem %s2, 60
    %v630 = vld [vmem:[%s629] sm:$0xf]
    %v631 = vld [vmem:[#allocation3 + $0x5] sm:$0x1]
    %v632 = vld [vmem:[#allocation3 + $0xd] sm:$0x1]
    %634 = vset.pattern.permute.xlu0 0
    %635 = vperm.xlu0 %634, %v630
    %v636 = vpop.permute.xlu0 %635
    %v638 = vlaneseq
    %v639 = vshrl.u32 %v638, 7
    %v640 = vsub.s32 0, %v639
    %v641 = vrot.slane %v631, %v640
    %v642 = vlaneseq
    %v643 = vshrl.u32 %v642, 7
    %v644 = vsub.s32 0, %v643
    %v645 = vrot.slane %v632, %v644
    %v646 = vmul.f32 %v636, %v641
    %v647 = vmul.f32 %v636, %v645
    %v648 = vadd.f32 %v627, %v646
    %v649 = vadd.f32 %v628, %v647
    %s650 = scalar_lea.vmem %s2, 64
    %v651 = vld [vmem:[%s650] sm:$0xf]
    %653 = vset.pattern.permute.xlu0 0
    %654 = vperm.xlu0 %653, %v651
    %v655 = vpop.permute.xlu0 %654
    %v657 = vmul.f32 %v655, %v641
    %v658 = vmul.f32 %v655, %v645
    %661 = vrot.lane.b32.xlu0 %v657, 127
    %v662 = vpop.permute.xlu0 %661
    %663 = vrot.lane.b32.xlu0 %v658, 127
    %v664 = vpop.permute.xlu0 %663
    %v667 = vadd.f32 %v648, %v662
    %v668 = vadd.f32 %v649, %v664
    %s669 = scalar_lea.vmem %s2, 68
    %v670 = vld [vmem:[%s669] sm:$0xf]
    %672 = vset.pattern.permute.xlu0 0
    %673 = vperm.xlu0 %672, %v670
    %v674 = vpop.permute.xlu0 %673
    %v676 = vmul.f32 %v674, %v641
    %v677 = vmul.f32 %v674, %v645
    %680 = vrot.lane.b32.xlu0 %v676, 126
    %v681 = vpop.permute.xlu0 %680
    %682 = vrot.lane.b32.xlu0 %v677, 126
    %v683 = vpop.permute.xlu0 %682
    %v686 = vadd.f32 %v667, %v681
    %v687 = vadd.f32 %v668, %v683
    %s688 = scalar_lea.vmem %s2, 72
    %v689 = vld [vmem:[%s688] sm:$0xf]
    %v690 = vld [vmem:[#allocation3 + $0x6] sm:$0x1]
    %v691 = vld [vmem:[#allocation3 + $0xe] sm:$0x1]
    %693 = vset.pattern.permute.xlu0 0
    %694 = vperm.xlu0 %693, %v689
    %v695 = vpop.permute.xlu0 %694
    %v697 = vlaneseq
    %v698 = vshrl.u32 %v697, 7
    %v699 = vsub.s32 0, %v698
    %v700 = vrot.slane %v690, %v699
    %v701 = vlaneseq
    %v702 = vshrl.u32 %v701, 7
    %v703 = vsub.s32 0, %v702
    %v704 = vrot.slane %v691, %v703
    %v705 = vmul.f32 %v695, %v700
    %v706 = vmul.f32 %v695, %v704
    %v707 = vadd.f32 %v686, %v705
    %v708 = vadd.f32 %v687, %v706
    %s709 = scalar_lea.vmem %s2, 76
    %v710 = vld [vmem:[%s709] sm:$0xf]
    %712 = vset.pattern.permute.xlu0 0
    %713 = vperm.xlu0 %712, %v710
    %v714 = vpop.permute.xlu0 %713
    %v716 = vmul.f32 %v714, %v700
    %v717 = vmul.f32 %v714, %v704
    %720 = vrot.lane.b32.xlu0 %v716, 127
    %v721 = vpop.permute.xlu0 %720
    %722 = vrot.lane.b32.xlu0 %v717, 127
    %v723 = vpop.permute.xlu0 %722
    %v726 = vadd.f32 %v707, %v721
    %v727 = vadd.f32 %v708, %v723
    %s728 = scalar_lea.vmem %s2, 80
    %v729 = vld [vmem:[%s728] sm:$0xf]
    %731 = vset.pattern.permute.xlu0 0
    %732 = vperm.xlu0 %731, %v729
    %v733 = vpop.permute.xlu0 %732
    %v735 = vmul.f32 %v733, %v700
    %v736 = vmul.f32 %v733, %v704
    %739 = vrot.lane.b32.xlu0 %v735, 126
    %v740 = vpop.permute.xlu0 %739
    %741 = vrot.lane.b32.xlu0 %v736, 126
    %v742 = vpop.permute.xlu0 %741
    %v745 = vadd.f32 %v726, %v740
    %v746 = vadd.f32 %v727, %v742
    %s747 = scalar_lea.vmem %s2, 84
    %v748 = vld [vmem:[%s747] sm:$0xf]
    %v749 = vld [vmem:[#allocation3 + $0x7] sm:$0x1]
    %v750 = vld [vmem:[#allocation3 + $0xf] sm:$0x1]
    %752 = vset.pattern.permute.xlu0 0
    %753 = vperm.xlu0 %752, %v748
    %v754 = vpop.permute.xlu0 %753
    %v756 = vlaneseq
    %v757 = vshrl.u32 %v756, 7
    %v758 = vsub.s32 0, %v757
    %v759 = vrot.slane %v749, %v758
    %v760 = vlaneseq
    %v761 = vshrl.u32 %v760, 7
    %v762 = vsub.s32 0, %v761
    %v763 = vrot.slane %v750, %v762
    %v764 = vmul.f32 %v754, %v759
    %v765 = vmul.f32 %v754, %v763
    %v766 = vadd.f32 %v745, %v764
    %v767 = vadd.f32 %v746, %v765
    %s768 = scalar_lea.vmem %s2, 88
    %v769 = vld [vmem:[%s768] sm:$0xf]
    %771 = vset.pattern.permute.xlu0 0
    %772 = vperm.xlu0 %771, %v769
    %v773 = vpop.permute.xlu0 %772
    %v775 = vmul.f32 %v773, %v759
    %v776 = vmul.f32 %v773, %v763
    %779 = vrot.lane.b32.xlu0 %v775, 127
    %v780 = vpop.permute.xlu0 %779
    %781 = vrot.lane.b32.xlu0 %v776, 127
    %v782 = vpop.permute.xlu0 %781
    %v785 = vadd.f32 %v766, %v780
    %v786 = vadd.f32 %v767, %v782
    %s787 = scalar_lea.vmem %s2, 92
    %v788 = vld [vmem:[%s787] sm:$0xf]
    %790 = vset.pattern.permute.xlu0 0
    %791 = vperm.xlu0 %790, %v788
    %v792 = vpop.permute.xlu0 %791
    %v794 = vmul.f32 %v792, %v759
    %v795 = vmul.f32 %v792, %v763
    %798 = vrot.lane.b32.xlu0 %v794, 126
    %v799 = vpop.permute.xlu0 %798
    %800 = vrot.lane.b32.xlu0 %v795, 126
    %v801 = vpop.permute.xlu0 %800
    %v804 = vadd.f32 %v785, %v799
    %v805 = vadd.f32 %v786, %v801
    %vm806 = vcmask 125952
    %v807 = vsel %vm806, %v804, 0.0
    %808 = vadd.xlane.f32.xlu0 %v807
    %v809 = vpop.xlane.xlu0 %808
    %v810 = vsel %vm806, %v805, 0.0
    %811 = vadd.xlane.f32.xlu0 %v810
    %v812 = vpop.xlane.xlu0 %811
    %vm813 = vcmask 1043456
    %v814 = vsel %vm813, %v809, 0.0
    %v815 = vsel %vm813, %v812, 0.0
    %v816 = vadd.f32 %v814, %v815
    %v817 = vmul.f32 %v816, 0.03125
    %v818 = vsub.f32 %v804, %v817
    %v819 = vsub.f32 %v805, %v817
    %v820 = vmul.f32 %v818, %v818
    %v821 = vmul.f32 %v819, %v819
    %v822 = vsel %vm806, %v820, 0.0
    %823 = vadd.xlane.f32.xlu0 %v822
    %v824 = vpop.xlane.xlu0 %823
    %v825 = vsel %vm806, %v821, 0.0
    %826 = vadd.xlane.f32.xlu0 %v825
    %v827 = vpop.xlane.xlu0 %826
    %v828 = vsel %vm813, %v824, 0.0
    %v829 = vsel %vm813, %v827, 0.0
    %v830 = vadd.f32 %v828, %v829
    %v831 = vmul.f32 %v830, 0.03125
    %v832 = vadd.f32 %v831, 1e-05
    %v833 = vrsqrt.pop %v832
    %v834 = vld [vmem:[%s5] sm:$0xf]
    %v835 = vmul.f32 %v818, %v833
    %v836 = vmul.f32 %v819, %v833
    %838 = vset.pattern.permute.xlu0 0
    %839 = vperm.xlu0 %838, %v834
    %v840 = vpop.permute.xlu0 %839
    %v842 = vmul.f32 %v840, %v835
    %v843 = vmul.f32 %v840, %v836
    %v844 = vld [vmem:[%s6] sm:$0xf]
    %846 = vset.pattern.permute.xlu0 0
    %847 = vperm.xlu0 %846, %v844
    %v848 = vpop.permute.xlu0 %847
    %v850 = vadd.f32 %v842, %v848
    %v851 = vadd.f32 %v843, %v848
    %v852 = vmax.f32 %v850, 0.0
    %v853 = vmax.f32 %v851, 0.0
    %v854 = vld [vmem:[%s0] sm:$0xf]
    %v855 = vld [vmem:[%s0 + $0x4] sm:$0xf]
    %v856 = vadd.f32 %v852, %v854
    %v857 = vadd.f32 %v853, %v855
    %858 = vst.msk [vmem:[#allocation4] sm:$0xf] %vm806, %v856
    %859 = vst.msk [vmem:[#allocation4 + $0x4] sm:$0xf] %vm806, %v857
    // Predicated region
    $region30: #{tpu_custom_call.1} parent=1 // pred_check
      _
    $region31: #{tpu_custom_call.1} parent=1 // pred_check_branch
      %861 = sbr.rel (0) target = $region33
    $region32: #{tpu_custom_call.1} parent=1 // pred_region
      %s863 = ssub.s32 128, 128
      %864 = vsyncadd [#allocation5], %s863
      %s865 = sshll.u32 [#allocation4], 4
      %s866 = int_to_ptr.vmem [resolvable:$true] %s865
      %871 = dma.vmem_to_hbm [thread:$0]  %s866, 128, %s7, [#allocation5], 64, 64, 4
    $region33: #{tpu_custom_call.1} parent=1 // pred_fallthru
      _
    // Predicated region
    $region34: #{tpu_custom_call.1} parent=1 // pred_check
      _
    $region35: #{tpu_custom_call.1} parent=1 // pred_check_branch
      %873 = sbr.rel (0) target = $region37
    $region36: #{tpu_custom_call.1} parent=1 // pred_region
      %874 = dma.done [#allocation5], 128
    $region37: #{tpu_custom_call.1} parent=1 // pred_fallthru
      _
    %875 = vsyncpa [#allocation5], 1

</llo_original>
